<compile_context>
chip_gen: v7x
topology: tpu7x:2x2x1
jax: 0.10.0
libtpu: 0.0.40
codegen_flags: <defaults>
</compile_context>

<pallas_src>
import functools

import jax
import jax.numpy as jnp
from jax.experimental import pallas as pl
from jax.experimental.pallas import tpu as pltpu


def _round_up(x, m):
    return (x + m - 1) // m * m


def _choose_tm(M, max_tm=512):
    """Tile size along M (multiples of 16 for bf16 sublane packing).

    Small M: single block.  Medium M: exactly two blocks so that on v7x the
    'parallel' M axis keeps both TensorCores busy.  Large M: pick the tile from
    {512, 256, 128} minimizing padded rows (ties -> larger tile)."""
    Mr = _round_up(M, 16)
    if Mr <= 64:
        return Mr, Mr
    if Mr <= 2 * max_tm:
        tm = _round_up(-(-M // 2), 16)
        return tm, 2 * tm
    best = None
    for t in (max_tm, max_tm // 2, max_tm // 4):
        mp = _round_up(M, t)
        key = (mp, -t)
        if best is None or key < best[0]:
            best = (key, t, mp)
    return best[1], best[2]


def _choose_tk(Kp, max_tk=1024):
    """Kp is a multiple of 128.  Single k-step when it fits; otherwise the
    largest multiple of 128 that divides Kp (keeps the grid exact)."""
    if Kp <= max_tk:
        return Kp
    tk = 128
    for t in range(256, max_tk + 1, 128):
        if Kp % t == 0:
            tk = t
    return tk


# ---------------------------------------------------------------------------
# Pallas kernel 1: tiled  O = [relu](X @ W + b)
# ---------------------------------------------------------------------------
def _matmul_bias_kernel(x_ref, w_ref, b_ref, o_ref, acc_ref, *, relu):
    k = pl.program_id(2)

    @pl.when(k == 0)
    def _init():
        acc_ref[...] = jnp.zeros_like(acc_ref)

    acc_ref[...] += jnp.dot(x_ref[...], w_ref[...],
                            preferred_element_type=jnp.float32)

    @pl.when(k == pl.num_programs(2) - 1)
    def _finalize():
        out = acc_ref[...] + b_ref[...]        # bias only in the epilogue
        if relu:
            out = jnp.maximum(out, 0.0)
        o_ref[...] = out.astype(o_ref.dtype)


def matmul_bias(x, w_p, b_p, *, n_out, relu, out_dtype=jnp.float32):
    """x: (M, K) float; w_p: (Kp, Np) bf16 pre-padded; b_p: (1, Np) f32 pre-padded.

    Returns (M, n_out) of out_dtype, optionally ReLU'd.  Padded K rows of w_p
    are zero so the zero-padded x columns never affect the result."""
    M, K = x.shape
    Kp, Np = w_p.shape
    assert K <= Kp and n_out <= Np
    TM, Mp = _choose_tm(M)
    TK = _choose_tk(Kp)
    TN = 256 if Np % 256 == 0 else 128

    xp = x if x.dtype == jnp.bfloat16 else x.astype(jnp.bfloat16)
    xp = jnp.pad(xp, ((0, Mp - M), (0, Kp - K)))

    grid = (Mp // TM, Np // TN, Kp // TK)
    kernel = functools.partial(_matmul_bias_kernel, relu=relu)
    out = pl.pallas_call(
        kernel,
        out_shape=jax.ShapeDtypeStruct((Mp, Np), out_dtype),
        grid=grid,
        in_specs=[
            pl.BlockSpec((TM, TK), lambda i, j, k: (i, k)),
            pl.BlockSpec((TK, TN), lambda i, j, k: (k, j)),
            pl.BlockSpec((1, TN), lambda i, j, k: (0, j)),
        ],
        out_specs=pl.BlockSpec((TM, TN), lambda i, j, k: (i, j)),
        scratch_shapes=[pltpu.VMEM((TM, TN), jnp.float32)],
        compiler_params=pltpu.CompilerParams(
            dimension_semantics=("parallel", "parallel", "arbitrary"),
            vmem_limit_bytes=32 * 1024 * 1024),
        cost_estimate=pl.CostEstimate(
            flops=2 * Mp * Np * Kp,
            transcendentals=0,
            bytes_accessed=int(xp.size * 2 * (Np // TN)
                               + w_p.size * 2 * (Mp // TM)
                               + Mp * Np * jnp.dtype(out_dtype).itemsize)),
    )(xp, w_p, b_p)
    return out[:M, :n_out]


# ---------------------------------------------------------------------------
# Pallas kernel 2: fused FC head  O = relu(X @ W1 + b1) @ W2 + b2
# ---------------------------------------------------------------------------
def _fc_head_kernel(x_ref, w1_ref, b1_ref, w2_ref, b2_ref, o_ref, h_ref):
    k = pl.program_id(1)

    @pl.when(k == 0)
    def _init():
        h_ref[...] = jnp.zeros_like(h_ref)

    h_ref[...] += jnp.dot(x_ref[...], w1_ref[...],
                          preferred_element_type=jnp.float32)

    @pl.when(k == pl.num_programs(1) - 1)
    def _finalize():
        h = jnp.maximum(h_ref[...] + b1_ref[...], 0.0)        # fc1 ReLU
        o = jnp.dot(h.astype(jnp.bfloat16), w2_ref[...],
                    preferred_element_type=jnp.float32) + b2_ref[...]
        o_ref[...] = o.astype(o_ref.dtype)


def fc_head(x, w1_p, b1_p, w2_p, b2_p, *, n_out):
    """relu(x @ w1 + b1) @ w2 + b2 in a single pallas_call (pre-padded weights)."""
    M, K = x.shape
    Kp, Hp = w1_p.shape
    Hp2, Np = w2_p.shape
    assert Hp == Hp2 and K <= Kp and n_out <= Np
    TM, Mp = _choose_tm(M)
    TK = _choose_tk(Kp)

    xp = x if x.dtype == jnp.bfloat16 else x.astype(jnp.bfloat16)
    xp = jnp.pad(xp, ((0, Mp - M), (0, Kp - K)))

    grid = (Mp // TM, Kp // TK)
    out = pl.pallas_call(
        _fc_head_kernel,
        out_shape=jax.ShapeDtypeStruct((Mp, Np), jnp.float32),
        grid=grid,
        in_specs=[
            pl.BlockSpec((TM, TK), lambda i, k: (i, k)),
            pl.BlockSpec((TK, Hp), lambda i, k: (k, 0)),
            pl.BlockSpec((1, Hp), lambda i, k: (0, 0)),
            pl.BlockSpec((Hp, Np), lambda i, k: (0, 0)),
            pl.BlockSpec((1, Np), lambda i, k: (0, 0)),
        ],
        out_specs=pl.BlockSpec((TM, Np), lambda i, k: (i, 0)),
        scratch_shapes=[pltpu.VMEM((TM, Hp), jnp.float32)],
        compiler_params=pltpu.CompilerParams(
            dimension_semantics=("parallel", "arbitrary"),
            vmem_limit_bytes=32 * 1024 * 1024),
        cost_estimate=pl.CostEstimate(
            flops=2 * Mp * Hp * Kp + 2 * Mp * Hp * Np,
            transcendentals=0,
            bytes_accessed=int(xp.size * 2 + w1_p.size * 2 + w2_p.size * 2
                               + Mp * Np * 4)),
    )(xp, w1_p, b1_p, w2_p, b2_p)
    return out[:M, :n_out]


# ---------------------------------------------------------------------------
# Conv2d (stride s, no padding) via fused patch extraction + Pallas matmul
# ---------------------------------------------------------------------------
def conv2d_relu(x_nhwc, w_p, b_p, *, co, ksize, stride):
    """x_nhwc: (B, H, W, Ci) bf16; w_p: (Kp, Np) bf16 im2col weight (rows in
    (Ci, kh, kw) order); b_p: (1, Np) f32.  Returns (B, Ho, Wo, co) bf16, ReLU'd."""
    kh, kw = ksize
    # TODO(synk): gather the (kh, kw) taps in-kernel via pl.ds instead of
    # materializing the duplicated im2col patch matrix in HBM.
    patches = jax.lax.conv_general_dilated_patches(
        x_nhwc, (kh, kw), (stride, stride), "VALID",
        dimension_numbers=("NHWC", "HWIO", "NHWC"))
    B, Ho, Wo, Kf = patches.shape
    out = matmul_bias(patches.reshape(B * Ho * Wo, Kf), w_p, b_p,
                      n_out=co, relu=True, out_dtype=jnp.bfloat16)
    return out.reshape(B, Ho, Wo, co)


# ---------------------------------------------------------------------------
# DQNSolver parameters, one-time preprocessing, forward
# ---------------------------------------------------------------------------
def init_params(key, in_channels, H, W, n_actions):
    ks = jax.random.split(key, 10)

    def winit(k, shape, fan_in):
        return (jax.random.normal(k, shape, jnp.float32) *
                (1.0 / jnp.sqrt(fan_in)))

    p = {}
    p["conv1_w"] = winit(ks[0], (32, in_channels, 8, 8), in_channels * 64)
    p["conv1_b"] = winit(ks[1], (32,), in_channels * 64)
    p["conv2_w"] = winit(ks[2], (64, 32, 4, 4), 32 * 16)
    p["conv2_b"] = winit(ks[3], (64,), 32 * 16)
    p["conv3_w"] = winit(ks[4], (64, 64, 3, 3), 64 * 9)
    p["conv3_b"] = winit(ks[5], (64,), 64 * 9)

    h3, w3 = _conv_out_hw(H, W)
    conv_out = 64 * h3 * w3
    p["fc1_w"] = winit(ks[6], (512, conv_out), conv_out)
    p["fc1_b"] = winit(ks[7], (512,), conv_out)
    p["fc2_w"] = winit(ks[8], (n_actions, 512), 512)
    p["fc2_b"] = winit(ks[9], (n_actions,), 512)
    return p


def _conv_out_hw(H, W):
    h1, w1 = (H - 8) // 4 + 1, (W - 8) // 4 + 1
    h2, w2 = (h1 - 4) // 2 + 1, (w1 - 4) // 2 + 1
    h3, w3 = (h2 - 3) // 1 + 1, (w2 - 3) // 1 + 1
    return h3, w3


def prepare_params(params, input_shape):
    """One-time per-parameter-set preprocessing (hoisted out of the forward):
    conv weights -> (Kf, Co) im2col layout, PyTorch NCHW flatten order folded
    into fc1, everything zero-padded to multiples of 128 and cast to bf16
    (biases stay f32 for the epilogue)."""
    C, H, W = input_shape

    def pad_w(w2d):   # (K, N) -> (Kp, Np) bf16
        K, N = w2d.shape
        Kp, Np = _round_up(K, 128), _round_up(N, 128)
        return jnp.pad(w2d, ((0, Kp - K), (0, Np - N))).astype(jnp.bfloat16)

    def pad_b(b):     # (N,) -> (1, Np) f32
        N = b.shape[0]
        Np = _round_up(N, 128)
        return jnp.pad(b, (0, Np - N)).reshape(1, Np).astype(jnp.float32)

    prep = {}
    for name in ("conv1", "conv2", "conv3"):
        w = params[name + "_w"]                     # (Co, Ci, kh, kw)
        Co = w.shape[0]
        # Patch features from conv_general_dilated_patches are ordered
        # (Ci, kh, kw), matching w.reshape(Co, Ci*kh*kw).
        prep[name + "_w"] = pad_w(w.reshape(Co, -1).T)
        prep[name + "_b"] = pad_b(params[name + "_b"])

    h3, w3 = _conv_out_hw(H, W)
    C3 = params["conv3_w"].shape[0]
    # Fold PyTorch's NCHW flatten ordering into fc1 (activations stay NHWC).
    w1 = params["fc1_w"].reshape(-1, C3, h3, w3)
    w1 = jnp.transpose(w1, (0, 2, 3, 1)).reshape(-1, C3 * h3 * w3)
    prep["fc1_w"] = pad_w(w1.T)
    prep["fc1_b"] = pad_b(params["fc1_b"])
    prep["fc2_w"] = pad_w(params["fc2_w"].T)
    prep["fc2_b"] = pad_b(params["fc2_b"])
    return prep


def dqn_forward(prep, x, n_actions):
    """x: (B, C, H, W) f32 (PyTorch NCHW) -> (B, n_actions) f32."""
    h = jnp.transpose(x, (0, 2, 3, 1)).astype(jnp.bfloat16)   # one-time NCHW->NHWC
    h = conv2d_relu(h, prep["conv1_w"], prep["conv1_b"],
                    co=32, ksize=(8, 8), stride=4)
    h = conv2d_relu(h, prep["conv2_w"], prep["conv2_b"],
                    co=64, ksize=(4, 4), stride=2)
    h = conv2d_relu(h, prep["conv3_w"], prep["conv3_b"],
                    co=64, ksize=(3, 3), stride=1)
    B, H3, W3, C3 = h.shape
    flat = h.reshape(B, H3 * W3 * C3)                         # NHWC flatten
    return fc_head(flat, prep["fc1_w"], prep["fc1_b"],
                   prep["fc2_w"], prep["fc2_b"], n_out=n_actions)


def dqn_forward_ref(params, x):
    """Pure-XLA reference with PyTorch semantics (NCHW + NCHW flatten)."""
    def conv(h, w, b, s):
        y = jax.lax.conv_general_dilated(
            h, w, (s, s), "VALID",
            dimension_numbers=("NCHW", "OIHW", "NCHW"))
        return jnp.maximum(y + b[None, :, None, None], 0.0)

    h = conv(x, params["conv1_w"], params["conv1_b"], 4)
    h = conv(h, params["conv2_w"], params["conv2_b"], 2)
    h = conv(h, params["conv3_w"], params["conv3_b"], 1)
    flat = h.reshape(x.shape[0], -1)
    h = jnp.maximum(flat @ params["fc1_w"].T + params["fc1_b"], 0.0)
    return h @ params["fc2_w"].T + params["fc2_b"]


if __name__ == "__main__":
    # Conv-arithmetic-consistent shapes: 44 -> 10 -> 4 -> 2 spatial, so the
    # NCHW flatten ordering (fc1 weight permutation) is actually exercised.
    B, C, H, W = 2, 4, 44, 44
    n_actions = 6

    key = jax.random.PRNGKey(0)
    kx, kp = jax.random.split(key)
    x = jax.random.normal(kx, (B, C, H, W), jnp.float32)
    params = init_params(kp, C, H, W, n_actions)

    prep = prepare_params(params, (C, H, W))        # once per parameter set
    fwd = jax.jit(dqn_forward, static_argnums=2)
    out = jax.block_until_ready(fwd(prep, x, n_actions))
    assert out.shape == (B, n_actions)

    ref = jax.block_until_ready(jax.jit(dqn_forward_ref)(params, x))
    assert jnp.allclose(out, ref, rtol=1e-1, atol=1e-1), (
        "max abs diff %f" % float(jnp.max(jnp.abs(out - ref))))

    print("KERNEL_OK")
</pallas_src>

<mosaic_0001>
module attributes {stable_mosaic.version = 11 : i64} {
  func.func @_matmul_bias_kernel(%arg0: i32, %arg1: i32, %arg2: i32, %arg3: memref<112x256xbf16, #tpu.memory_space<vmem>>, %arg4: memref<256x128xbf16, #tpu.memory_space<vmem>>, %arg5: memref<1x128xf32, #tpu.memory_space<vmem>>, %arg6: memref<112x128xbf16, #tpu.memory_space<vmem>>, %arg7: memref<112x128xf32, #tpu.memory_space<vmem>>) attributes {dimension_semantics = [#tpu.dimension_semantics<parallel>, #tpu.dimension_semantics<parallel>, #tpu.dimension_semantics<arbitrary>], iteration_bounds = array<i64: 2, 1, 1>, scalar_prefetch = 0 : i64, scratch_operands = 1 : i64, tpu.core_type = #tpu.core_type<tc>, window_params = [{transform_indices = @transform_0, window_bounds = array<i64: 112, 256>}, {transform_indices = @transform_1, window_bounds = array<i64: 256, 128>}, {transform_indices = @transform_2, window_bounds = array<i64: 1, 128>}, {transform_indices = @transform_3, window_bounds = array<i64: 112, 128>}]} {
    %c0_i32 = arith.constant 0 : i32
    %0 = arith.cmpi eq, %arg2, %c0_i32 : i32
    %1 = arith.extui %0 : i1 to i32
    %c0_i32_0 = arith.constant 0 : i32
    %2 = arith.cmpi ne, %1, %c0_i32_0 : i32
    scf.if %2 {
      %cst_10 = arith.constant 0.000000e+00 : f32
      %12 = vector.broadcast %cst_10 : f32 to vector<112x128xf32>
      %c0_11 = arith.constant 0 : index
      %c0_12 = arith.constant 0 : index
      %13 = vector.load %arg7[%c0_11, %c0_12] : memref<112x128xf32, #tpu.memory_space<vmem>>, vector<112x128xf32>
      tpu.vector_store %arg7[%c0_11, %c0_12], %12 {strides = array<i32>} : memref<112x128xf32, #tpu.memory_space<vmem>>, vector<112x128xf32>,
    } else {
    }
    %c0 = arith.constant 0 : index
    %c0_1 = arith.constant 0 : index
    %3 = vector.load %arg7[%c0, %c0_1] : memref<112x128xf32, #tpu.memory_space<vmem>>, vector<112x128xf32>
    %c0_2 = arith.constant 0 : index
    %c0_3 = arith.constant 0 : index
    %4 = vector.load %arg3[%c0_2, %c0_3] : memref<112x256xbf16, #tpu.memory_space<vmem>>, vector<112x256xbf16>
    %c0_4 = arith.constant 0 : index
    %c0_5 = arith.constant 0 : index
    %5 = vector.load %arg4[%c0_4, %c0_5] : memref<256x128xbf16, #tpu.memory_space<vmem>>, vector<256x128xbf16>
    %cst = arith.constant dense<0.000000e+00> : vector<112x128xf32>
    %6 = tpu.matmul %4, %5, %cst {dimension_numbers = #tpu.dot_dimension_numbers<[1], [0], [0], [1], [0, 0, 1, 1], [], []>} : vector<112x256xbf16>, vector<256x128xbf16>, vector<112x128xf32> -> vector<112x128xf32>
    %7 = arith.addf %3, %6 : vector<112x128xf32>
    %c0_6 = arith.constant 0 : index
    %c0_7 = arith.constant 0 : index
    %8 = vector.load %arg7[%c0_6, %c0_7] : memref<112x128xf32, #tpu.memory_space<vmem>>, vector<112x128xf32>
    tpu.vector_store %arg7[%c0_6, %c0_7], %7 {strides = array<i32>} : memref<112x128xf32, #tpu.memory_space<vmem>>, vector<112x128xf32>,
    %c0_i32_8 = arith.constant 0 : i32
    %9 = arith.cmpi eq, %arg2, %c0_i32_8 : i32
    %10 = arith.extui %9 : i1 to i32
    %c0_i32_9 = arith.constant 0 : i32
    %11 = arith.cmpi ne, %10, %c0_i32_9 : i32
    scf.if %11 {
      %c0_10 = arith.constant 0 : index
      %c0_11 = arith.constant 0 : index
      %12 = vector.load %arg7[%c0_10, %c0_11] : memref<112x128xf32, #tpu.memory_space<vmem>>, vector<112x128xf32>
      %c0_12 = arith.constant 0 : index
      %c0_13 = arith.constant 0 : index
      %13 = vector.load %arg5[%c0_12, %c0_13] : memref<1x128xf32, #tpu.memory_space<vmem>>, vector<1x128xf32>
      %14 = vector.broadcast %13 : vector<1x128xf32> to vector<112x128xf32>
      %15 = arith.addf %12, %14 : vector<112x128xf32>
      %cst_14 = arith.constant 0.000000e+00 : f32
      %16 = vector.broadcast %cst_14 : f32 to vector<112x128xf32>
      %17 = arith.maximumf %15, %16 : vector<112x128xf32>
      %18 = arith.truncf %17 : vector<112x128xf32> to vector<112x128xbf16>
      %c0_15 = arith.constant 0 : index
      %c0_16 = arith.constant 0 : index
      %19 = vector.load %arg6[%c0_15, %c0_16] : memref<112x128xbf16, #tpu.memory_space<vmem>>, vector<112x128xbf16>
      tpu.vector_store %arg6[%c0_15, %c0_16], %18 {strides = array<i32>} : memref<112x128xbf16, #tpu.memory_space<vmem>>, vector<112x128xbf16>,
    } else {
    }
    return
  }
  func.func @transform_0(%arg0: i32, %arg1: i32, %arg2: i32) -> (i32, i32) {
    %c0_i32 = arith.constant 0 : i32
    return %arg0, %arg2 : i32, i32
  }
  func.func @transform_1(%arg0: i32, %arg1: i32, %arg2: i32) -> (i32, i32) {
    %c0_i32 = arith.constant 0 : i32
    return %arg2, %arg1 : i32, i32
  }
  func.func @transform_2(%arg0: i32, %arg1: i32, %arg2: i32) -> (i32, i32) {
    %c0_i32 = arith.constant 0 : i32
    %c0_i32_0 = arith.constant 0 : i32
    return %c0_i32, %arg1 : i32, i32
  }
  func.func @transform_3(%arg0: i32, %arg1: i32, %arg2: i32) -> (i32, i32) {
    %c0_i32 = arith.constant 0 : i32
    return %arg0, %arg1 : i32, i32
  }
}

module attributes {stable_mosaic.version = 11 : i64} {
  func.func @_matmul_bias_kernel(%arg0: i32, %arg1: i32, %arg2: i32, %arg3: memref<32x512xbf16, #tpu.memory_space<vmem>>, %arg4: memref<512x128xbf16, #tpu.memory_space<vmem>>, %arg5: memref<1x128xf32, #tpu.memory_space<vmem>>, %arg6: memref<32x128xbf16, #tpu.memory_space<vmem>>, %arg7: memref<32x128xf32, #tpu.memory_space<vmem>>) attributes {dimension_semantics = [#tpu.dimension_semantics<parallel>, #tpu.dimension_semantics<parallel>, #tpu.dimension_semantics<arbitrary>], iteration_bounds = array<i64: 1, 1, 1>, scalar_prefetch = 0 : i64, scratch_operands = 1 : i64, tpu.core_type = #tpu.core_type<tc>, window_params = [{transform_indices = @transform_0, window_bounds = array<i64: 32, 512>}, {transform_indices = @transform_1, window_bounds = array<i64: 512, 128>}, {transform_indices = @transform_2, window_bounds = array<i64: 1, 128>}, {transform_indices = @transform_3, window_bounds = array<i64: 32, 128>}]} {
    %c0_i32 = arith.constant 0 : i32
    %0 = arith.cmpi eq, %arg2, %c0_i32 : i32
    %1 = arith.extui %0 : i1 to i32
    %c0_i32_0 = arith.constant 0 : i32
    %2 = arith.cmpi ne, %1, %c0_i32_0 : i32
    scf.if %2 {
      %cst_10 = arith.constant 0.000000e+00 : f32
      %12 = vector.broadcast %cst_10 : f32 to vector<32x128xf32>
      %c0_11 = arith.constant 0 : index
      %c0_12 = arith.constant 0 : index
      %13 = vector.load %arg7[%c0_11, %c0_12] : memref<32x128xf32, #tpu.memory_space<vmem>>, vector<32x128xf32>
      tpu.vector_store %arg7[%c0_11, %c0_12], %12 {strides = array<i32>} : memref<32x128xf32, #tpu.memory_space<vmem>>, vector<32x128xf32>,
    } else {
    }
    %c0 = arith.constant 0 : index
    %c0_1 = arith.constant 0 : index
    %3 = vector.load %arg7[%c0, %c0_1] : memref<32x128xf32, #tpu.memory_space<vmem>>, vector<32x128xf32>
    %c0_2 = arith.constant 0 : index
    %c0_3 = arith.constant 0 : index
    %4 = vector.load %arg3[%c0_2, %c0_3] : memref<32x512xbf16, #tpu.memory_space<vmem>>, vector<32x512xbf16>
    %c0_4 = arith.constant 0 : index
    %c0_5 = arith.constant 0 : index
    %5 = vector.load %arg4[%c0_4, %c0_5] : memref<512x128xbf16, #tpu.memory_space<vmem>>, vector<512x128xbf16>
    %cst = arith.constant dense<0.000000e+00> : vector<32x128xf32>
    %6 = tpu.matmul %4, %5, %cst {dimension_numbers = #tpu.dot_dimension_numbers<[1], [0], [0], [1], [0, 0, 1, 1], [], []>} : vector<32x512xbf16>, vector<512x128xbf16>, vector<32x128xf32> -> vector<32x128xf32>
    %7 = arith.addf %3, %6 : vector<32x128xf32>
    %c0_6 = arith.constant 0 : index
    %c0_7 = arith.constant 0 : index
    %8 = vector.load %arg7[%c0_6, %c0_7] : memref<32x128xf32, #tpu.memory_space<vmem>>, vector<32x128xf32>
    tpu.vector_store %arg7[%c0_6, %c0_7], %7 {strides = array<i32>} : memref<32x128xf32, #tpu.memory_space<vmem>>, vector<32x128xf32>,
    %c0_i32_8 = arith.constant 0 : i32
    %9 = arith.cmpi eq, %arg2, %c0_i32_8 : i32
    %10 = arith.extui %9 : i1 to i32
    %c0_i32_9 = arith.constant 0 : i32
    %11 = arith.cmpi ne, %10, %c0_i32_9 : i32
    scf.if %11 {
      %c0_10 = arith.constant 0 : index
      %c0_11 = arith.constant 0 : index
      %12 = vector.load %arg7[%c0_10, %c0_11] : memref<32x128xf32, #tpu.memory_space<vmem>>, vector<32x128xf32>
      %c0_12 = arith.constant 0 : index
      %c0_13 = arith.constant 0 : index
      %13 = vector.load %arg5[%c0_12, %c0_13] : memref<1x128xf32, #tpu.memory_space<vmem>>, vector<1x128xf32>
      %14 = vector.broadcast %13 : vector<1x128xf32> to vector<32x128xf32>
      %15 = arith.addf %12, %14 : vector<32x128xf32>
      %cst_14 = arith.constant 0.000000e+00 : f32
      %16 = vector.broadcast %cst_14 : f32 to vector<32x128xf32>
      %17 = arith.maximumf %15, %16 : vector<32x128xf32>
      %18 = arith.truncf %17 : vector<32x128xf32> to vector<32x128xbf16>
      %c0_15 = arith.constant 0 : index
      %c0_16 = arith.constant 0 : index
      %19 = vector.load %arg6[%c0_15, %c0_16] : memref<32x128xbf16, #tpu.memory_space<vmem>>, vector<32x128xbf16>
      tpu.vector_store %arg6[%c0_15, %c0_16], %18 {strides = array<i32>} : memref<32x128xbf16, #tpu.memory_space<vmem>>, vector<32x128xbf16>,
    } else {
    }
    return
  }
  func.func @transform_0(%arg0: i32, %arg1: i32, %arg2: i32) -> (i32, i32) {
    %c0_i32 = arith.constant 0 : i32
    return %arg0, %arg2 : i32, i32
  }
  func.func @transform_1(%arg0: i32, %arg1: i32, %arg2: i32) -> (i32, i32) {
    %c0_i32 = arith.constant 0 : i32
    return %arg2, %arg1 : i32, i32
  }
  func.func @transform_2(%arg0: i32, %arg1: i32, %arg2: i32) -> (i32, i32) {
    %c0_i32 = arith.constant 0 : i32
    %c0_i32_0 = arith.constant 0 : i32
    return %c0_i32, %arg1 : i32, i32
  }
  func.func @transform_3(%arg0: i32, %arg1: i32, %arg2: i32) -> (i32, i32) {
    %c0_i32 = arith.constant 0 : i32
    return %arg0, %arg1 : i32, i32
  }
}

module attributes {stable_mosaic.version = 11 : i64} {
  func.func @_matmul_bias_kernel(%arg0: i32, %arg1: i32, %arg2: i32, %arg3: memref<16x640xbf16, #tpu.memory_space<vmem>>, %arg4: memref<640x128xbf16, #tpu.memory_space<vmem>>, %arg5: memref<1x128xf32, #tpu.memory_space<vmem>>, %arg6: memref<16x128xbf16, #tpu.memory_space<vmem>>, %arg7: memref<16x128xf32, #tpu.memory_space<vmem>>) attributes {dimension_semantics = [#tpu.dimension_semantics<parallel>, #tpu.dimension_semantics<parallel>, #tpu.dimension_semantics<arbitrary>], iteration_bounds = array<i64: 1, 1, 1>, scalar_prefetch = 0 : i64, scratch_operands = 1 : i64, tpu.core_type = #tpu.core_type<tc>, window_params = [{transform_indices = @transform_0, window_bounds = array<i64: 16, 640>}, {transform_indices = @transform_1, window_bounds = array<i64: 640, 128>}, {transform_indices = @transform_2, window_bounds = array<i64: 1, 128>}, {transform_indices = @transform_3, window_bounds = array<i64: 16, 128>}]} {
    %c0_i32 = arith.constant 0 : i32
    %0 = arith.cmpi eq, %arg2, %c0_i32 : i32
    %1 = arith.extui %0 : i1 to i32
    %c0_i32_0 = arith.constant 0 : i32
    %2 = arith.cmpi ne, %1, %c0_i32_0 : i32
    scf.if %2 {
      %cst_10 = arith.constant 0.000000e+00 : f32
      %12 = vector.broadcast %cst_10 : f32 to vector<16x128xf32>
      %c0_11 = arith.constant 0 : index
      %c0_12 = arith.constant 0 : index
      %13 = vector.load %arg7[%c0_11, %c0_12] : memref<16x128xf32, #tpu.memory_space<vmem>>, vector<16x128xf32>
      tpu.vector_store %arg7[%c0_11, %c0_12], %12 {strides = array<i32>} : memref<16x128xf32, #tpu.memory_space<vmem>>, vector<16x128xf32>,
    } else {
    }
    %c0 = arith.constant 0 : index
    %c0_1 = arith.constant 0 : index
    %3 = vector.load %arg7[%c0, %c0_1] : memref<16x128xf32, #tpu.memory_space<vmem>>, vector<16x128xf32>
    %c0_2 = arith.constant 0 : index
    %c0_3 = arith.constant 0 : index
    %4 = vector.load %arg3[%c0_2, %c0_3] : memref<16x640xbf16, #tpu.memory_space<vmem>>, vector<16x640xbf16>
    %c0_4 = arith.constant 0 : index
    %c0_5 = arith.constant 0 : index
    %5 = vector.load %arg4[%c0_4, %c0_5] : memref<640x128xbf16, #tpu.memory_space<vmem>>, vector<640x128xbf16>
    %cst = arith.constant dense<0.000000e+00> : vector<16x128xf32>
    %6 = tpu.matmul %4, %5, %cst {dimension_numbers = #tpu.dot_dimension_numbers<[1], [0], [0], [1], [0, 0, 1, 1], [], []>} : vector<16x640xbf16>, vector<640x128xbf16>, vector<16x128xf32> -> vector<16x128xf32>
    %7 = arith.addf %3, %6 : vector<16x128xf32>
    %c0_6 = arith.constant 0 : index
    %c0_7 = arith.constant 0 : index
    %8 = vector.load %arg7[%c0_6, %c0_7] : memref<16x128xf32, #tpu.memory_space<vmem>>, vector<16x128xf32>
    tpu.vector_store %arg7[%c0_6, %c0_7], %7 {strides = array<i32>} : memref<16x128xf32, #tpu.memory_space<vmem>>, vector<16x128xf32>,
    %c0_i32_8 = arith.constant 0 : i32
    %9 = arith.cmpi eq, %arg2, %c0_i32_8 : i32
    %10 = arith.extui %9 : i1 to i32
    %c0_i32_9 = arith.constant 0 : i32
    %11 = arith.cmpi ne, %10, %c0_i32_9 : i32
    scf.if %11 {
      %c0_10 = arith.constant 0 : index
      %c0_11 = arith.constant 0 : index
      %12 = vector.load %arg7[%c0_10, %c0_11] : memref<16x128xf32, #tpu.memory_space<vmem>>, vector<16x128xf32>
      %c0_12 = arith.constant 0 : index
      %c0_13 = arith.constant 0 : index
      %13 = vector.load %arg5[%c0_12, %c0_13] : memref<1x128xf32, #tpu.memory_space<vmem>>, vector<1x128xf32>
      %14 = vector.broadcast %13 : vector<1x128xf32> to vector<16x128xf32>
      %15 = arith.addf %12, %14 : vector<16x128xf32>
      %cst_14 = arith.constant 0.000000e+00 : f32
      %16 = vector.broadcast %cst_14 : f32 to vector<16x128xf32>
      %17 = arith.maximumf %15, %16 : vector<16x128xf32>
      %18 = arith.truncf %17 : vector<16x128xf32> to vector<16x128xbf16>
      %c0_15 = arith.constant 0 : index
      %c0_16 = arith.constant 0 : index
      %19 = vector.load %arg6[%c0_15, %c0_16] : memref<16x128xbf16, #tpu.memory_space<vmem>>, vector<16x128xbf16>
      tpu.vector_store %arg6[%c0_15, %c0_16], %18 {strides = array<i32>} : memref<16x128xbf16, #tpu.memory_space<vmem>>, vector<16x128xbf16>,
    } else {
    }
    return
  }
  func.func @transform_0(%arg0: i32, %arg1: i32, %arg2: i32) -> (i32, i32) {
    %c0_i32 = arith.constant 0 : i32
    return %arg0, %arg2 : i32, i32
  }
  func.func @transform_1(%arg0: i32, %arg1: i32, %arg2: i32) -> (i32, i32) {
    %c0_i32 = arith.constant 0 : i32
    return %arg2, %arg1 : i32, i32
  }
  func.func @transform_2(%arg0: i32, %arg1: i32, %arg2: i32) -> (i32, i32) {
    %c0_i32 = arith.constant 0 : i32
    %c0_i32_0 = arith.constant 0 : i32
    return %c0_i32, %arg1 : i32, i32
  }
  func.func @transform_3(%arg0: i32, %arg1: i32, %arg2: i32) -> (i32, i32) {
    %c0_i32 = arith.constant 0 : i32
    return %arg0, %arg1 : i32, i32
  }
}

module attributes {stable_mosaic.version = 11 : i64} {
  func.func @_fc_head_kernel(%arg0: i32, %arg1: i32, %arg2: memref<16x256xbf16, #tpu.memory_space<vmem>>, %arg3: memref<256x512xbf16, #tpu.memory_space<vmem>>, %arg4: memref<1x512xf32, #tpu.memory_space<vmem>>, %arg5: memref<512x128xbf16, #tpu.memory_space<vmem>>, %arg6: memref<1x128xf32, #tpu.memory_space<vmem>>, %arg7: memref<16x128xf32, #tpu.memory_space<vmem>>, %arg8: memref<16x512xf32, #tpu.memory_space<vmem>>) attributes {dimension_semantics = [#tpu.dimension_semantics<parallel>, #tpu.dimension_semantics<arbitrary>], iteration_bounds = array<i64: 1, 1>, scalar_prefetch = 0 : i64, scratch_operands = 1 : i64, tpu.core_type = #tpu.core_type<tc>, window_params = [{transform_indices = @transform_0, window_bounds = array<i64: 16, 256>}, {transform_indices = @transform_1, window_bounds = array<i64: 256, 512>}, {pipeline_mode = #tpu.pipeline_mode<synchronous>, transform_indices = @transform_2, window_bounds = array<i64: 1, 512>}, {pipeline_mode = #tpu.pipeline_mode<synchronous>, transform_indices = @transform_3, window_bounds = array<i64: 512, 128>}, {pipeline_mode = #tpu.pipeline_mode<synchronous>, transform_indices = @transform_4, window_bounds = array<i64: 1, 128>}, {transform_indices = @transform_5, window_bounds = array<i64: 16, 128>}]} {
    %c0_i32 = arith.constant 0 : i32
    %0 = arith.cmpi eq, %arg1, %c0_i32 : i32
    %1 = arith.extui %0 : i1 to i32
    %c0_i32_0 = arith.constant 0 : i32
    %2 = arith.cmpi ne, %1, %c0_i32_0 : i32
    scf.if %2 {
      %cst_10 = arith.constant 0.000000e+00 : f32
      %12 = vector.broadcast %cst_10 : f32 to vector<16x512xf32>
      %c0_11 = arith.constant 0 : index
      %c0_12 = arith.constant 0 : index
      %13 = vector.load %arg8[%c0_11, %c0_12] : memref<16x512xf32, #tpu.memory_space<vmem>>, vector<16x512xf32>
      tpu.vector_store %arg8[%c0_11, %c0_12], %12 {strides = array<i32>} : memref<16x512xf32, #tpu.memory_space<vmem>>, vector<16x512xf32>,
    } else {
    }
    %c0 = arith.constant 0 : index
    %c0_1 = arith.constant 0 : index
    %3 = vector.load %arg8[%c0, %c0_1] : memref<16x512xf32, #tpu.memory_space<vmem>>, vector<16x512xf32>
    %c0_2 = arith.constant 0 : index
    %c0_3 = arith.constant 0 : index
    %4 = vector.load %arg2[%c0_2, %c0_3] : memref<16x256xbf16, #tpu.memory_space<vmem>>, vector<16x256xbf16>
    %c0_4 = arith.constant 0 : index
    %c0_5 = arith.constant 0 : index
    %5 = vector.load %arg3[%c0_4, %c0_5] : memref<256x512xbf16, #tpu.memory_space<vmem>>, vector<256x512xbf16>
    %cst = arith.constant dense<0.000000e+00> : vector<16x512xf32>
    %6 = tpu.matmul %4, %5, %cst {dimension_numbers = #tpu.dot_dimension_numbers<[1], [0], [0], [1], [0, 0, 1, 1], [], []>} : vector<16x256xbf16>, vector<256x512xbf16>, vector<16x512xf32> -> vector<16x512xf32>
    %7 = arith.addf %3, %6 : vector<16x512xf32>
    %c0_6 = arith.constant 0 : index
    %c0_7 = arith.constant 0 : index
    %8 = vector.load %arg8[%c0_6, %c0_7] : memref<16x512xf32, #tpu.memory_space<vmem>>, vector<16x512xf32>
    tpu.vector_store %arg8[%c0_6, %c0_7], %7 {strides = array<i32>} : memref<16x512xf32, #tpu.memory_space<vmem>>, vector<16x512xf32>,
    %c0_i32_8 = arith.constant 0 : i32
    %9 = arith.cmpi eq, %arg1, %c0_i32_8 : i32
    %10 = arith.extui %9 : i1 to i32
    %c0_i32_9 = arith.constant 0 : i32
    %11 = arith.cmpi ne, %10, %c0_i32_9 : i32
    scf.if %11 {
      %c0_10 = arith.constant 0 : index
      %c0_11 = arith.constant 0 : index
      %12 = vector.load %arg8[%c0_10, %c0_11] : memref<16x512xf32, #tpu.memory_space<vmem>>, vector<16x512xf32>
      %c0_12 = arith.constant 0 : index
      %c0_13 = arith.constant 0 : index
      %13 = vector.load %arg4[%c0_12, %c0_13] : memref<1x512xf32, #tpu.memory_space<vmem>>, vector<1x512xf32>
      %14 = vector.broadcast %13 : vector<1x512xf32> to vector<16x512xf32>
      %15 = arith.addf %12, %14 : vector<16x512xf32>
      %cst_14 = arith.constant 0.000000e+00 : f32
      %16 = vector.broadcast %cst_14 : f32 to vector<16x512xf32>
      %17 = arith.maximumf %15, %16 : vector<16x512xf32>
      %18 = arith.truncf %17 : vector<16x512xf32> to vector<16x512xbf16>
      %c0_15 = arith.constant 0 : index
      %c0_16 = arith.constant 0 : index
      %19 = vector.load %arg5[%c0_15, %c0_16] : memref<512x128xbf16, #tpu.memory_space<vmem>>, vector<512x128xbf16>
      %cst_17 = arith.constant dense<0.000000e+00> : vector<16x128xf32>
      %20 = tpu.matmul %18, %19, %cst_17 {dimension_numbers = #tpu.dot_dimension_numbers<[1], [0], [0], [1], [0, 0, 1, 1], [], []>} : vector<16x512xbf16>, vector<512x128xbf16>, vector<16x128xf32> -> vector<16x128xf32>
      %c0_18 = arith.constant 0 : index
      %c0_19 = arith.constant 0 : index
      %21 = vector.load %arg6[%c0_18, %c0_19] : memref<1x128xf32, #tpu.memory_space<vmem>>, vector<1x128xf32>
      %22 = vector.broadcast %21 : vector<1x128xf32> to vector<16x128xf32>
      %23 = arith.addf %20, %22 : vector<16x128xf32>
      %c0_20 = arith.constant 0 : index
      %c0_21 = arith.constant 0 : index
      %24 = vector.load %arg7[%c0_20, %c0_21] : memref<16x128xf32, #tpu.memory_space<vmem>>, vector<16x128xf32>
      tpu.vector_store %arg7[%c0_20, %c0_21], %23 {strides = array<i32>} : memref<16x128xf32, #tpu.memory_space<vmem>>, vector<16x128xf32>,
    } else {
    }
    return
  }
  func.func @transform_0(%arg0: i32, %arg1: i32) -> (i32, i32) {
    %c0_i32 = arith.constant 0 : i32
    return %arg0, %arg1 : i32, i32
  }
  func.func @transform_1(%arg0: i32, %arg1: i32) -> (i32, i32) {
    %c0_i32 = arith.constant 0 : i32
    %c0_i32_0 = arith.constant 0 : i32
    return %arg1, %c0_i32 : i32, i32
  }
  func.func @transform_2(%arg0: i32, %arg1: i32) -> (i32, i32) {
    %c0_i32 = arith.constant 0 : i32
    %c0_i32_0 = arith.constant 0 : i32
    %c0_i32_1 = arith.constant 0 : i32
    return %c0_i32, %c0_i32_0 : i32, i32
  }
  func.func @transform_3(%arg0: i32, %arg1: i32) -> (i32, i32) {
    %c0_i32 = arith.constant 0 : i32
    %c0_i32_0 = arith.constant 0 : i32
    %c0_i32_1 = arith.constant 0 : i32
    return %c0_i32, %c0_i32_0 : i32, i32
  }
  func.func @transform_4(%arg0: i32, %arg1: i32) -> (i32, i32) {
    %c0_i32 = arith.constant 0 : i32
    %c0_i32_0 = arith.constant 0 : i32
    %c0_i32_1 = arith.constant 0 : i32
    return %c0_i32, %c0_i32_0 : i32, i32
  }
  func.func @transform_5(%arg0: i32, %arg1: i32) -> (i32, i32) {
    %c0_i32 = arith.constant 0 : i32
    %c0_i32_0 = arith.constant 0 : i32
    return %arg0, %c0_i32 : i32, i32
  }
}

</mosaic_0001>

<llo_original>
// kernel: dqn_forward.4
$region0: #{dqn_forward.4}
  #allocation0 [shape = 'u32[]', space=smem, size = 0x4, offset = 0x4, fixed_abs, tag = 'smem constant byte address 0x4 - core index']
  #allocation1 [shape = 'u32[144,128]{1,0:T(1,128)}', space=vmem, size = 0x12000, scoped, tag = 'internal scratch']
  #allocation2 [shape = 'f32[112,128]{1,0:T(8,128)}', space=vmem, size = 0xe000, scoped, tag = 'scratch operand']
  %s0 = inlined_call_operand.vmem [shape: bf16[224,256], index: 0, kind: input, shape index: {}]
  %s1 = inlined_call_operand.vmem [shape: bf16[256,128], index: 1, kind: input, shape index: {}]
  %s2 = inlined_call_operand.vmem [shape: f32[1,128], index: 2, kind: input, shape index: {}]
  %s3 = inlined_call_operand.vmem [shape: bf16[224,128], index: 3, kind: output, shape index: {}]
  %s4 = sld [smem:[#allocation0]]
  $region53: #{dqn_forward.4} parent=0
    _
  %s6 = ssub.s32 1, %s4
  %s7 = scalar_select 0, %s6, %s4
  loop: start=0, step=1, limit=4
  $region2: #{dqn_forward.4} parent=0 // loop_pre_header
    _
  $region3: #{dqn_forward.4} parent=0 // loop_header
    %s9 = sphi 0, %s13
    %p10 = scmp.ge.s32.totalorder %s9, 4
    %s16 = sphi 0, %s35
    %s17 = sphi 0, %s31
    %s18 = sphi 0, %s27
    %s19 = sphi 0, %s16
    %s20 = sphi 0, %s17
    %s21 = sphi 0, %s18
    %s22 = sphi 0, %s19
    %s23 = sphi 0, %s20
    %s24 = sphi 0, %s21
    %s40 = sphi 0, %s42
    %s43 = sphi 0, %s40
    %s44 = sphi 0, %s43
    %s60 = sphi 0, %s44
    %s68 = sphi 0, %s70
    %s71 = sphi 0, %s68
    %s72 = sphi 0, %s71
    %s88 = sphi 0, %s72
    %s94 = sphi 0, %s96
    %s97 = sphi 0, %s94
    %s98 = sphi 0, %s97
    %s114 = sphi 0, %s98
    %s122 = sphi 0, %s124
    %s125 = sphi 0, %s122
    %s126 = sphi 0, %s125
    %s142 = sphi 0, %s126
  $region4: #{dqn_forward.4} parent=0 // loop_header_branch
    %12 = sbr.rel (%p10) target = $region8
  $region5: #{dqn_forward.4} parent=0 // loop_body
    %s14 = ssub.s32 %s9, 1
    %s15 = ssub.s32 %s9, 2
    %s25 = sadd.s32 1, %s18
    %p26 = scmp.ge.s32.totalorder %s25, 1
    %s27 = scalar_select %p26, 0, %s25
    %s28 = sadd.s32 1, %s17
    %s29 = scalar_select %p26, %s28, %s17
    %p30 = scmp.ge.s32.totalorder %s29, 1
    %s31 = scalar_select %p30, 0, %s29
    %s32 = sadd.s32 1, %s16
    %s33 = scalar_select %p30, %s32, %s16
    %p34 = scmp.ge.s32.totalorder %s33, 2
    %s35 = scalar_select %p34, 0, %s33
    %s36 = ssub.s32 %s16, %s35
    %s37 = ssub.s32 %s18, %s27
    %s38 = sor.u32 %s36, %s37
    %p39 = scmp.eq.s32.totalorder %s38, 0
    %s41 = sadd.s32 %s40, 1
    %s42 = scalar_select %p39, %s40, %s41
    %p45 = pneg %p39
    %p46 = scmp.eq.s32.totalorder %s9, 1
    %p47 = por %p45, %p46
    %p48 = scmp.ne.s32.totalorder %s40, %s43
    %p49 = scmp.eq.s32.totalorder %s9, 0
    %p50 = por %p48, %p49
    %p51 = scmp.ne.s32.totalorder %s40, %s43
    %p52 = scmp.eq.s32.totalorder %s14, 1
    %p53 = por %p51, %p52
    %p54 = scmp.ne.s32.totalorder %s43, %s44
    %p55 = scmp.eq.s32.totalorder %s14, 0
    %p56 = por %p54, %p55
    %p57 = scmp.ne.s32.totalorder %s43, %s44
    %p58 = scmp.eq.s32.totalorder %s15, 1
    %p59 = por %p57, %p58
    %p61 = scmp.ne.s32.totalorder %s44, %s60
    %p62 = scmp.eq.s32.totalorder %s15, 0
    %p63 = por %p61, %p62
    %s64 = ssub.s32 %s18, %s27
    %s65 = ssub.s32 %s17, %s31
    %s66 = sor.u32 %s64, %s65
    %p67 = scmp.eq.s32.totalorder %s66, 0
    %s69 = sadd.s32 %s68, 1
    %s70 = scalar_select %p67, %s68, %s69
    %p73 = pneg %p67
    %p74 = scmp.eq.s32.totalorder %s9, 1
    %p75 = por %p73, %p74
    %p76 = scmp.ne.s32.totalorder %s68, %s71
    %p77 = scmp.eq.s32.totalorder %s9, 0
    %p78 = por %p76, %p77
    %p79 = scmp.ne.s32.totalorder %s68, %s71
    %p80 = scmp.eq.s32.totalorder %s14, 1
    %p81 = por %p79, %p80
    %p82 = scmp.ne.s32.totalorder %s71, %s72
    %p83 = scmp.eq.s32.totalorder %s14, 0
    %p84 = por %p82, %p83
    %p85 = scmp.ne.s32.totalorder %s71, %s72
    %p86 = scmp.eq.s32.totalorder %s15, 1
    %p87 = por %p85, %p86
    %p89 = scmp.ne.s32.totalorder %s72, %s88
    %p90 = scmp.eq.s32.totalorder %s15, 0
    %p91 = por %p89, %p90
    %s92 = ssub.s32 %s17, %s31
    %p93 = scmp.eq.s32.totalorder %s92, 0
    %s95 = sadd.s32 %s94, 1
    %s96 = scalar_select %p93, %s94, %s95
    %p99 = pneg %p93
    %p100 = scmp.eq.s32.totalorder %s9, 1
    %p101 = por %p99, %p100
    %p102 = scmp.ne.s32.totalorder %s94, %s97
    %p103 = scmp.eq.s32.totalorder %s9, 0
    %p104 = por %p102, %p103
    %p105 = scmp.ne.s32.totalorder %s94, %s97
    %p106 = scmp.eq.s32.totalorder %s14, 1
    %p107 = por %p105, %p106
    %p108 = scmp.ne.s32.totalorder %s97, %s98
    %p109 = scmp.eq.s32.totalorder %s14, 0
    %p110 = por %p108, %p109
    %p111 = scmp.ne.s32.totalorder %s97, %s98
    %p112 = scmp.eq.s32.totalorder %s15, 1
    %p113 = por %p111, %p112
    %p115 = scmp.ne.s32.totalorder %s98, %s114
    %p116 = scmp.eq.s32.totalorder %s15, 0
    %p117 = por %p115, %p116
    %s118 = ssub.s32 %s16, %s35
    %s119 = ssub.s32 %s17, %s31
    %s120 = sor.u32 %s118, %s119
    %p121 = scmp.eq.s32.totalorder %s120, 0
    %s123 = sadd.s32 %s122, 1
    %s124 = scalar_select %p121, %s122, %s123
    %p127 = pneg %p121
    %p128 = scmp.eq.s32.totalorder %s9, 1
    %p129 = por %p127, %p128
    %p130 = scmp.ne.s32.totalorder %s122, %s125
    %p131 = scmp.eq.s32.totalorder %s9, 0
    %p132 = por %p130, %p131
    %p133 = scmp.ne.s32.totalorder %s122, %s125
    %p134 = scmp.eq.s32.totalorder %s14, 1
    %p135 = por %p133, %p134
    %p136 = scmp.ne.s32.totalorder %s125, %s126
    %p137 = scmp.eq.s32.totalorder %s14, 0
    %p138 = por %p136, %p137
    %p139 = scmp.ne.s32.totalorder %s125, %s126
    %p140 = scmp.eq.s32.totalorder %s15, 1
    %p141 = por %p139, %p140
    %p143 = scmp.ne.s32.totalorder %s126, %s142
    %p144 = scmp.eq.s32.totalorder %s15, 0
    %p145 = por %p143, %p144
    %p146 = scmp.le.s32.totalorder 1, %s9
    %p147 = scmp.lt.s32.totalorder %s9, 3
    %p148 = pnand %p146, %p147
    %p149 = pneg %p148
    // Predicated region
    $region9: #{dqn_forward.4} parent=5 // pred_check
      _
    $region10: #{dqn_forward.4} parent=5 // pred_check_branch
      %151 = sbr.rel (%p148) target = $region12
    $region11: #{dqn_forward.4} parent=5 // pred_region
      %s152 = ssub.s32 %s9, 1
      // Predicated region
      $region13: #{dqn_forward.4} parent=11 // pred_check
        %p153 = pneg %p84
      $region14: #{dqn_forward.4} parent=11 // pred_check_branch
        %155 = sbr.rel (%p153) target = $region16
      $region15: #{dqn_forward.4} parent=11 // pred_region
        %s156 = smul.u32 32, %s21
        %p157 = scmp.lt.s32.totalorder %s156, 31
        %s158 = scalar_select %p157, %s156, 31
        %p159 = scmp.lt.s32.totalorder %s20, 0
        %s160 = scalar_select %p159, %s20, 0
        %s161 = sadd.s32 %s160, %s158
        %s162 = smul.addr %s161, 4
        %s163 = scalar_lea.vmem %s1, %s162
        %s164 = smul.u32 32, %s21
      $region16: #{dqn_forward.4} parent=11 // pred_fallthru
        _
      // Predicated region
      $region17: #{dqn_forward.4} parent=11 // pred_check
        %p165 = pneg %p110
      $region18: #{dqn_forward.4} parent=11 // pred_check_branch
        %167 = sbr.rel (%p165) target = $region20
      $region19: #{dqn_forward.4} parent=11 // pred_region
        %p168 = scmp.lt.s32.totalorder %s20, 0
        %s169 = scalar_select %p168, %s20, 0
        %s170 = scalar_lea.vmem %s2, %s169
      $region20: #{dqn_forward.4} parent=11 // pred_fallthru
        _
    $region12: #{dqn_forward.4} parent=5 // pred_fallthru
      _
    %p171 = scmp.lt.s32.totalorder %s9, 2
    // Predicated region
    $region21: #{dqn_forward.4} parent=5 // pred_check
      %p172 = pneg %p171
    $region22: #{dqn_forward.4} parent=5 // pred_check_branch
      %174 = sbr.rel (%p172) target = $region24
    $region23: #{dqn_forward.4} parent=5 // pred_region
      // Predicated region
      $region25: #{dqn_forward.4} parent=23 // pred_check
        %p175 = pneg %p50
      $region26: #{dqn_forward.4} parent=23 // pred_check_branch
        %177 = sbr.rel (%p175) target = $region28
      $region27: #{dqn_forward.4} parent=23 // pred_region
        %s178 = smul.u32 14, %s16
        %s179 = smul.u32 2, %s18
        %p180 = scmp.lt.s32.totalorder %s178, 27
        %s181 = scalar_select %p180, %s178, 27
        %p182 = scmp.lt.s32.totalorder %s179, 1
        %s183 = scalar_select %p182, %s179, 1
        %s184 = smul.addr %s181, 2
        %s185 = sadd.s32 %s183, %s184
        %s186 = smul.addr %s185, 4
        %s187 = scalar_lea.vmem %s0, %s186
        %s188 = smul.u32 14, %s16
        %s189 = smul.u32 2, %s18
      $region28: #{dqn_forward.4} parent=23 // pred_fallthru
        _
    $region24: #{dqn_forward.4} parent=5 // pred_fallthru
      _
    %p190 = scmp.le.s32.totalorder 1, %s9
    %p191 = scmp.lt.s32.totalorder %s9, 3
    %p192 = pnand %p190, %p191
    %p193 = pneg %p192
    // Predicated region
    $region29: #{dqn_forward.4} parent=5 // pred_check
      _
    $region30: #{dqn_forward.4} parent=5 // pred_check_branch
      %195 = sbr.rel (%p192) target = $region32
    $region31: #{dqn_forward.4} parent=5 // pred_region
      %s196 = ssub.s32 %s9, 1
      %s197 = smul.u32 14, %s19
      %s198 = smul.u32 2, %s21
      %p199 = scmp.lt.s32.totalorder %s197, 27
      %s200 = scalar_select %p199, %s197, 27
      %p201 = scmp.lt.s32.totalorder %s198, 1
      %s202 = scalar_select %p201, %s198, 1
      %s203 = smul.addr %s200, 2
      %s204 = sadd.s32 %s202, %s203
      %s205 = smul.addr %s204, 4
      %s206 = scalar_lea.vmem %s0, %s205
      %p207 = pneg %p56
      %p208 = pneg %p53
      %s209 = smul.u32 32, %s21
      %p210 = scmp.lt.s32.totalorder %s209, 31
      %s211 = scalar_select %p210, %s209, 31
      %p212 = scmp.lt.s32.totalorder %s20, 0
      %s213 = scalar_select %p212, %s20, 0
      %s214 = sadd.s32 %s213, %s211
      %s215 = smul.addr %s214, 4
      %s216 = scalar_lea.vmem %s1, %s215
      %p217 = pneg %p84
      %p218 = pneg %p81
      %p219 = scmp.lt.s32.totalorder %s20, 0
      %s220 = scalar_select %p219, %s20, 0
      %s221 = scalar_lea.vmem %s2, %s220
      %p222 = pneg %p110
      %p223 = pneg %p107
      %p224 = pneg %p138
      %p225 = pneg %p135
      %s226 = smul.u32 14, %s19
      %p227 = scmp.lt.s32.totalorder %s226, 27
      %s228 = scalar_select %p227, %s226, 27
      %p229 = scmp.lt.s32.totalorder %s20, 0
      %s230 = scalar_select %p229, %s20, 0
      %s231 = sadd.s32 %s230, %s228
      %s232 = smul.addr %s231, 4
      %s233 = scalar_lea.vmem %s3, %s232
      %s234 = smul.u32 14, %s19
      %s235 = smul.u32 2, %s21
      %p236 = scmp.lt.s32.totalorder %s234, 27
      %s237 = scalar_select %p236, %s234, 27
      %p238 = scmp.lt.s32.totalorder %s235, 1
      %s239 = scalar_select %p238, %s235, 1
      %s240 = smul.addr %s237, 2
      %s241 = sadd.s32 %s239, %s240
      %s242 = smul.addr %s241, 4
      %s243 = scalar_lea.vmem %s0, %s242
      %s244 = smul.u32 14, %s19
      %s245 = smul.u32 2, %s21
      %s246 = smul.u32 32, %s21
      %p247 = scmp.lt.s32.totalorder %s246, 31
      %s248 = scalar_select %p247, %s246, 31
      %p249 = scmp.lt.s32.totalorder %s20, 0
      %s250 = scalar_select %p249, %s20, 0
      %s251 = sadd.s32 %s250, %s248
      %s252 = smul.addr %s251, 4
      %s253 = scalar_lea.vmem %s1, %s252
      %s254 = smul.u32 32, %s21
      %p255 = scmp.lt.s32.totalorder %s20, 0
      %s256 = scalar_select %p255, %s20, 0
      %s257 = scalar_lea.vmem %s2, %s256
      %s258 = smul.u32 14, %s19
      %p259 = scmp.lt.s32.totalorder %s258, 27
      %s260 = scalar_select %p259, %s258, 27
      %p261 = scmp.lt.s32.totalorder %s20, 0
      %s262 = scalar_select %p261, %s20, 0
      %s263 = sadd.s32 %s262, %s260
      %s264 = smul.addr %s263, 4
      %s265 = scalar_lea.vmem %s3, %s264
      %s266 = smul.u32 14, %s19
      %p268 = scmp.eq.s32.totalorder %s21, 0
      // Predicated region
      $region33: #{dqn_forward.4} parent=31 // pred_check
        %p269 = pneg %p268
      $region34: #{dqn_forward.4} parent=31 // pred_check_branch
        %271 = sbr.rel (%p269) target = $region36
      $region35: #{dqn_forward.4} parent=31 // pred_region
        %272 = vst [vmem:[#allocation2] sm:$0xff] 0.0
        %273 = vst [vmem:[#allocation2 + $0x8] sm:$0xff] 0.0
        %274 = vst [vmem:[#allocation2 + $0x10] sm:$0xff] 0.0
        %275 = vst [vmem:[#allocation2 + $0x18] sm:$0xff] 0.0
        %276 = vst [vmem:[#allocation2 + $0x20] sm:$0xff] 0.0
        %277 = vst [vmem:[#allocation2 + $0x28] sm:$0xff] 0.0
        %278 = vst [vmem:[#allocation2 + $0x30] sm:$0xff] 0.0
        %279 = vst [vmem:[#allocation2 + $0x38] sm:$0xff] 0.0
        %280 = vst [vmem:[#allocation2 + $0x40] sm:$0xff] 0.0
        %281 = vst [vmem:[#allocation2 + $0x48] sm:$0xff] 0.0
        %282 = vst [vmem:[#allocation2 + $0x50] sm:$0xff] 0.0
        %283 = vst [vmem:[#allocation2 + $0x58] sm:$0xff] 0.0
        %284 = vst [vmem:[#allocation2 + $0x60] sm:$0xff] 0.0
        %285 = vst [vmem:[#allocation2 + $0x68] sm:$0xff] 0.0
      $region36: #{dqn_forward.4} parent=31 // pred_fallthru
        _
      %v286 = vld [vmem:[#allocation2] sm:$0xff]
      %v287 = vld [vmem:[#allocation2 + $0x8] sm:$0xff]
      %v288 = vld [vmem:[#allocation2 + $0x10] sm:$0xff]
      %v289 = vld [vmem:[#allocation2 + $0x18] sm:$0xff]
      %v290 = vld [vmem:[#allocation2 + $0x20] sm:$0xff]
      %v291 = vld [vmem:[#allocation2 + $0x28] sm:$0xff]
      %v292 = vld [vmem:[#allocation2 + $0x30] sm:$0xff]
      %v293 = vld [vmem:[#allocation2 + $0x38] sm:$0xff]
      %v294 = vld [vmem:[#allocation2 + $0x40] sm:$0xff]
      %v295 = vld [vmem:[#allocation2 + $0x48] sm:$0xff]
      %v296 = vld [vmem:[#allocation2 + $0x50] sm:$0xff]
      %v297 = vld [vmem:[#allocation2 + $0x58] sm:$0xff]
      %v298 = vld [vmem:[#allocation2 + $0x60] sm:$0xff]
      %v299 = vld [vmem:[#allocation2 + $0x68] sm:$0xff]
      %v300 = vld [vmem:[%s243] sm:$0xff]
      %v301 = vld [vmem:[%s243 + $0x8] sm:$0xff]
      %v302 = vld [vmem:[%s243 + $0x10] sm:$0xff]
      %v303 = vld [vmem:[%s243 + $0x18] sm:$0xff]
      %v304 = vld [vmem:[%s243 + $0x20] sm:$0xff]
      %v305 = vld [vmem:[%s243 + $0x28] sm:$0xff]
      %v306 = vld [vmem:[%s243 + $0x30] sm:$0xff]
      %v307 = vld [vmem:[%s243 + $0x38] sm:$0xff]
      %v308 = vld [vmem:[%s243 + $0x40] sm:$0xff]
      %v309 = vld [vmem:[%s243 + $0x48] sm:$0xff]
      %v310 = vld [vmem:[%s243 + $0x50] sm:$0xff]
      %v311 = vld [vmem:[%s243 + $0x58] sm:$0xff]
      %v312 = vld [vmem:[%s243 + $0x60] sm:$0xff]
      %v313 = vld [vmem:[%s243 + $0x68] sm:$0xff]
      %v314 = vld [vmem:[%s253] sm:$0xf]
      %v315 = vld [vmem:[%s253 + $0x4] sm:$0xf]
      %v316 = vld [vmem:[%s253 + $0x8] sm:$0xf]
      %v317 = vld [vmem:[%s253 + $0xc] sm:$0xf]
      %v318 = vld [vmem:[%s253 + $0x10] sm:$0xf]
      %v319 = vld [vmem:[%s253 + $0x14] sm:$0xf]
      %v320 = vld [vmem:[%s253 + $0x18] sm:$0xf]
      %v321 = vld [vmem:[%s253 + $0x1c] sm:$0xf]
      %v322 = vld [vmem:[%s253 + $0x20] sm:$0xf]
      %v323 = vld [vmem:[%s253 + $0x24] sm:$0xf]
      %v324 = vld [vmem:[%s253 + $0x28] sm:$0xf]
      %v325 = vld [vmem:[%s253 + $0x2c] sm:$0xf]
      %v326 = vld [vmem:[%s253 + $0x30] sm:$0xf]
      %v327 = vld [vmem:[%s253 + $0x34] sm:$0xf]
      %v328 = vld [vmem:[%s253 + $0x38] sm:$0xf]
      %v329 = vld [vmem:[%s253 + $0x3c] sm:$0xf]
      %v330 = vld [vmem:[%s253 + $0x40] sm:$0xf]
      %v331 = vld [vmem:[%s253 + $0x44] sm:$0xf]
      %v332 = vld [vmem:[%s253 + $0x48] sm:$0xf]
      %v333 = vld [vmem:[%s253 + $0x4c] sm:$0xf]
      %v334 = vld [vmem:[%s253 + $0x50] sm:$0xf]
      %v335 = vld [vmem:[%s253 + $0x54] sm:$0xf]
      %v336 = vld [vmem:[%s253 + $0x58] sm:$0xf]
      %v337 = vld [vmem:[%s253 + $0x5c] sm:$0xf]
      %v338 = vld [vmem:[%s253 + $0x60] sm:$0xf]
      %v339 = vld [vmem:[%s253 + $0x64] sm:$0xf]
      %v340 = vld [vmem:[%s253 + $0x68] sm:$0xf]
      %v341 = vld [vmem:[%s253 + $0x6c] sm:$0xf]
      %v342 = vld [vmem:[%s253 + $0x70] sm:$0xf]
      %v343 = vld [vmem:[%s253 + $0x74] sm:$0xf]
      %v344 = vld [vmem:[%s253 + $0x78] sm:$0xf]
      %v345 = vld [vmem:[%s253 + $0x7c] sm:$0xf]
      %v360 = vunpack.c.l.b16 %v300
      %v361 = vunpack.c.h.b16 %v300
      %v362 = vunpack.c.l.b16 %v301
      %v363 = vunpack.c.h.b16 %v301
      %v364 = vunpack.c.l.b16 %v302
      %v365 = vunpack.c.h.b16 %v302
      %v366 = vunpack.c.l.b16 %v303
      %v367 = vunpack.c.h.b16 %v303
      %v368 = vunpack.c.l.b16 %v304
      %v369 = vunpack.c.h.b16 %v304
      %v370 = vunpack.c.l.b16 %v305
      %v371 = vunpack.c.h.b16 %v305
      %v372 = vunpack.c.l.b16 %v306
      %v373 = vunpack.c.h.b16 %v306
      %v374 = vunpack.c.l.b16 %v307
      %v375 = vunpack.c.h.b16 %v307
      %v376 = vunpack.c.l.b16 %v308
      %v377 = vunpack.c.h.b16 %v308
      %v378 = vunpack.c.l.b16 %v309
      %v379 = vunpack.c.h.b16 %v309
      %v380 = vunpack.c.l.b16 %v310
      %v381 = vunpack.c.h.b16 %v310
      %v382 = vunpack.c.l.b16 %v311
      %v383 = vunpack.c.h.b16 %v311
      %v384 = vunpack.c.l.b16 %v312
      %v385 = vunpack.c.h.b16 %v312
      %v386 = vunpack.c.l.b16 %v313
      %v387 = vunpack.c.h.b16 %v313
      %v388 = vpack.c.b16 %v362, %v360
      %v389 = vpack.c.b16 %v363, %v361
      %v390 = vpack.c.b16 %v366, %v364
      %v391 = vpack.c.b16 %v367, %v365
      %v392 = vpack.c.b16 %v370, %v368
      %v393 = vpack.c.b16 %v371, %v369
      %v394 = vpack.c.b16 %v374, %v372
      %v395 = vpack.c.b16 %v375, %v373
      %v396 = vpack.c.b16 %v378, %v376
      %v397 = vpack.c.b16 %v379, %v377
      %v398 = vpack.c.b16 %v382, %v380
      %v399 = vpack.c.b16 %v383, %v381
      %v400 = vpack.c.b16 %v386, %v384
      %v401 = vpack.c.b16 %v387, %v385
      %v448 = vunpack.c.l.b16 %v314
      %v449 = vunpack.c.l.b16 %v315
      %v450 = vunpack.c.l.b16 %v316
      %v451 = vunpack.c.l.b16 %v317
      %v452 = vunpack.c.l.b16 %v318
      %v453 = vunpack.c.l.b16 %v319
      %v454 = vunpack.c.l.b16 %v320
      %v455 = vunpack.c.l.b16 %v321
      %v456 = vunpack.c.l.b16 %v322
      %v457 = vunpack.c.l.b16 %v323
      %v458 = vunpack.c.l.b16 %v324
      %v459 = vunpack.c.l.b16 %v325
      %v460 = vunpack.c.l.b16 %v326
      %v461 = vunpack.c.l.b16 %v327
      %v462 = vunpack.c.l.b16 %v328
      %v463 = vunpack.c.l.b16 %v329
      %v464 = vunpack.c.l.b16 %v330
      %v465 = vunpack.c.l.b16 %v331
      %v466 = vunpack.c.l.b16 %v332
      %v467 = vunpack.c.l.b16 %v333
      %v468 = vunpack.c.l.b16 %v334
      %v469 = vunpack.c.l.b16 %v335
      %v470 = vunpack.c.l.b16 %v336
      %v471 = vunpack.c.l.b16 %v337
      %v472 = vunpack.c.l.b16 %v338
      %v473 = vunpack.c.l.b16 %v339
      %v474 = vunpack.c.l.b16 %v340
      %v475 = vunpack.c.l.b16 %v341
      %v476 = vunpack.c.l.b16 %v342
      %v477 = vunpack.c.l.b16 %v343
      %v478 = vunpack.c.l.b16 %v344
      %v479 = vunpack.c.l.b16 %v345
      %v480 = vpack.c.b16 %v449, %v448
      %v481 = vpack.c.b16 %v451, %v450
      %v482 = vpack.c.b16 %v453, %v452
      %v483 = vpack.c.b16 %v455, %v454
      %v484 = vpack.c.b16 %v457, %v456
      %v485 = vpack.c.b16 %v459, %v458
      %v486 = vpack.c.b16 %v461, %v460
      %v487 = vpack.c.b16 %v463, %v462
      %v488 = vpack.c.b16 %v465, %v464
      %v489 = vpack.c.b16 %v467, %v466
      %v490 = vpack.c.b16 %v469, %v468
      %v491 = vpack.c.b16 %v471, %v470
      %v492 = vpack.c.b16 %v473, %v472
      %v493 = vpack.c.b16 %v475, %v474
      %v494 = vpack.c.b16 %v477, %v476
      %v495 = vpack.c.b16 %v479, %v478
      %512 = vmatprep.subr.bf16.mxu0 0
      %513 = vmatpush1.bf16.msra.mxu0 %v480
      %514 = vmatprep.subr.bf16.mxu0 0
      %515 = vmatpush1.bf16.msra.mxu0 %v481
      %516 = vmatprep.subr.bf16.mxu0 0
      %517 = vmatpush1.bf16.msra.mxu0 %v482
      %518 = vmatprep.subr.bf16.mxu0 0
      %519 = vmatpush1.bf16.msra.mxu0 %v483
      %520 = vmatprep.subr.bf16.mxu0 0
      %521 = vmatpush1.bf16.msra.mxu0 %v484
      %522 = vmatprep.subr.bf16.mxu0 0
      %523 = vmatpush1.bf16.msra.mxu0 %v485
      %524 = vmatprep.subr.bf16.mxu0 0
      %525 = vmatpush1.bf16.msra.mxu0 %v486
      %526 = vmatprep.subr.bf16.mxu0 0
      %527 = vmatpush1.bf16.msra.mxu0 %v487
      %528 = vmatprep.subr.bf16.mxu0 0
      %529 = vmatpush1.bf16.msra.mxu0 %v488
      %530 = vmatprep.subr.bf16.mxu0 0
      %531 = vmatpush1.bf16.msra.mxu0 %v489
      %532 = vmatprep.subr.bf16.mxu0 0
      %533 = vmatpush1.bf16.msra.mxu0 %v490
      %534 = vmatprep.subr.bf16.mxu0 0
      %535 = vmatpush1.bf16.msra.mxu0 %v491
      %536 = vmatprep.subr.bf16.mxu0 0
      %537 = vmatpush1.bf16.msra.mxu0 %v492
      %538 = vmatprep.subr.bf16.mxu0 0
      %539 = vmatpush1.bf16.msra.mxu0 %v493
      %540 = vmatprep.subr.bf16.mxu0 0
      %541 = vmatpush1.bf16.msra.mxu0 %v494
      %542 = vmatprep.subr.bf16.mxu0 0
      %543 = vmatpush1.bf16.msra.mxu0 %v495
      %544 = vmatprep.mubr.bf16.mxu0 %v389
      %545 = vmatmul.mubr.bf16.gmra.mrb[0].mxu0 %v388
      %v546 = vpop.f32.mrb[0].mxu0
      %v547 = vadd.f32 0.0, %v546
      %v548 = vpop.f32.mrb[0].mxu0
      %v549 = vpop.f32.mrb[0].mxu0
      %v550 = vadd.f32 0.0, %v549
      %v551 = vpop.f32.mrb[0].mxu0
      %552 = vmatprep.mubr.bf16.mxu0 %v391
      %553 = vmatmul.mubr.bf16.gmra.mrb[0].mxu0 %v390
      %v554 = vpop.f32.mrb[0].mxu0
      %v555 = vadd.f32 0.0, %v554
      %v556 = vpop.f32.mrb[0].mxu0
      %v557 = vpop.f32.mrb[0].mxu0
      %v558 = vadd.f32 0.0, %v557
      %v559 = vpop.f32.mrb[0].mxu0
      %560 = vmatprep.mubr.bf16.mxu0 %v393
      %561 = vmatmul.mubr.bf16.gmra.mrb[0].mxu0 %v392
      %v562 = vpop.f32.mrb[0].mxu0
      %v563 = vadd.f32 0.0, %v562
      %v564 = vpop.f32.mrb[0].mxu0
      %v565 = vpop.f32.mrb[0].mxu0
      %v566 = vadd.f32 0.0, %v565
      %v567 = vpop.f32.mrb[0].mxu0
      %568 = vmatprep.mubr.bf16.mxu0 %v395
      %569 = vmatmul.mubr.bf16.gmra.mrb[0].mxu0 %v394
      %v570 = vpop.f32.mrb[0].mxu0
      %v571 = vadd.f32 0.0, %v570
      %v572 = vpop.f32.mrb[0].mxu0
      %v573 = vpop.f32.mrb[0].mxu0
      %v574 = vadd.f32 0.0, %v573
      %v575 = vpop.f32.mrb[0].mxu0
      %576 = vmatprep.mubr.bf16.mxu0 %v397
      %577 = vmatmul.mubr.bf16.gmra.mrb[0].mxu0 %v396
      %v578 = vpop.f32.mrb[0].mxu0
      %v579 = vadd.f32 0.0, %v578
      %v580 = vpop.f32.mrb[0].mxu0
      %v581 = vpop.f32.mrb[0].mxu0
      %v582 = vadd.f32 0.0, %v581
      %v583 = vpop.f32.mrb[0].mxu0
      %584 = vmatprep.mubr.bf16.mxu0 %v399
      %585 = vmatmul.mubr.bf16.gmra.mrb[0].mxu0 %v398
      %v586 = vpop.f32.mrb[0].mxu0
      %v587 = vadd.f32 0.0, %v586
      %v588 = vpop.f32.mrb[0].mxu0
      %v589 = vpop.f32.mrb[0].mxu0
      %v590 = vadd.f32 0.0, %v589
      %v591 = vpop.f32.mrb[0].mxu0
      %592 = vmatprep.mubr.bf16.mxu0 %v401
      %593 = vmatmul.mubr.bf16.gmra.mrb[0].mxu0 %v400
      %v594 = vpop.f32.mrb[0].mxu0
      %v595 = vadd.f32 0.0, %v594
      %v596 = vpop.f32.mrb[0].mxu0
      %v597 = vpop.f32.mrb[0].mxu0
      %v598 = vadd.f32 0.0, %v597
      %v599 = vpop.f32.mrb[0].mxu0
      %600 = vdwg.mxu0
      %v601 = vadd.f32 %v286, %v547
      %v602 = vadd.f32 %v287, %v550
      %v603 = vadd.f32 %v288, %v555
      %v604 = vadd.f32 %v289, %v558
      %v605 = vadd.f32 %v290, %v563
      %v606 = vadd.f32 %v291, %v566
      %v607 = vadd.f32 %v292, %v571
      %v608 = vadd.f32 %v293, %v574
      %v609 = vadd.f32 %v294, %v579
      %v610 = vadd.f32 %v295, %v582
      %v611 = vadd.f32 %v296, %v587
      %v612 = vadd.f32 %v297, %v590
      %v613 = vadd.f32 %v298, %v595
      %v614 = vadd.f32 %v299, %v598
      %615 = vst [vmem:[#allocation2] sm:$0xff] %v601
      %616 = vst [vmem:[#allocation2 + $0x8] sm:$0xff] %v602
      %617 = vst [vmem:[#allocation2 + $0x10] sm:$0xff] %v603
      %618 = vst [vmem:[#allocation2 + $0x18] sm:$0xff] %v604
      %619 = vst [vmem:[#allocation2 + $0x20] sm:$0xff] %v605
      %620 = vst [vmem:[#allocation2 + $0x28] sm:$0xff] %v606
      %621 = vst [vmem:[#allocation2 + $0x30] sm:$0xff] %v607
      %622 = vst [vmem:[#allocation2 + $0x38] sm:$0xff] %v608
      %623 = vst [vmem:[#allocation2 + $0x40] sm:$0xff] %v609
      %624 = vst [vmem:[#allocation2 + $0x48] sm:$0xff] %v610
      %625 = vst [vmem:[#allocation2 + $0x50] sm:$0xff] %v611
      %626 = vst [vmem:[#allocation2 + $0x58] sm:$0xff] %v612
      %627 = vst [vmem:[#allocation2 + $0x60] sm:$0xff] %v613
      %628 = vst [vmem:[#allocation2 + $0x68] sm:$0xff] %v614
      // Predicated region
      $region37: #{dqn_forward.4} parent=31 // pred_check
        %p629 = pneg %p268
      $region38: #{dqn_forward.4} parent=31 // pred_check_branch
        %631 = sbr.rel (%p629) target = $region40
      $region39: #{dqn_forward.4} parent=31 // pred_region
        %v632 = vld [vmem:[#allocation2] sm:$0xff]
        %v633 = vld [vmem:[#allocation2 + $0x8] sm:$0xff]
        %v634 = vld [vmem:[#allocation2 + $0x10] sm:$0xff]
        %v635 = vld [vmem:[#allocation2 + $0x18] sm:$0xff]
        %v636 = vld [vmem:[#allocation2 + $0x20] sm:$0xff]
        %v637 = vld [vmem:[#allocation2 + $0x28] sm:$0xff]
        %v638 = vld [vmem:[#allocation2 + $0x30] sm:$0xff]
        %v639 = vld [vmem:[#allocation2 + $0x38] sm:$0xff]
        %v640 = vld [vmem:[#allocation2 + $0x40] sm:$0xff]
        %v641 = vld [vmem:[#allocation2 + $0x48] sm:$0xff]
        %v642 = vld [vmem:[#allocation2 + $0x50] sm:$0xff]
        %v643 = vld [vmem:[#allocation2 + $0x58] sm:$0xff]
        %v644 = vld [vmem:[#allocation2 + $0x60] sm:$0xff]
        %v645 = vld [vmem:[#allocation2 + $0x68] sm:$0xff]
        %v646 = vld [vmem:[%s257] sm:$0x1]
        %v648 = vlaneseq
        %v649 = vshrl.u32 %v648, 7
        %v650 = vsub.s32 0, %v649
        %v651 = vrot.slane %v646, %v650
        %v653 = vadd.f32 %v632, %v651
        %v654 = vadd.f32 %v633, %v651
        %v655 = vadd.f32 %v634, %v651
        %v656 = vadd.f32 %v635, %v651
        %v657 = vadd.f32 %v636, %v651
        %v658 = vadd.f32 %v637, %v651
        %v659 = vadd.f32 %v638, %v651
        %v660 = vadd.f32 %v639, %v651
        %v661 = vadd.f32 %v640, %v651
        %v662 = vadd.f32 %v641, %v651
        %v663 = vadd.f32 %v642, %v651
        %v664 = vadd.f32 %v643, %v651
        %v665 = vadd.f32 %v644, %v651
        %v666 = vadd.f32 %v645, %v651
        %v667 = vmax.f32 %v653, 0.0
        %v668 = vmax.f32 %v654, 0.0
        %v669 = vmax.f32 %v655, 0.0
        %v670 = vmax.f32 %v656, 0.0
        %v671 = vmax.f32 %v657, 0.0
        %v672 = vmax.f32 %v658, 0.0
        %v673 = vmax.f32 %v659, 0.0
        %v674 = vmax.f32 %v660, 0.0
        %v675 = vmax.f32 %v661, 0.0
        %v676 = vmax.f32 %v662, 0.0
        %v677 = vmax.f32 %v663, 0.0
        %v678 = vmax.f32 %v664, 0.0
        %v679 = vmax.f32 %v665, 0.0
        %v680 = vmax.f32 %v666, 0.0
        %v681 = vpack.c.bf16 %v668, %v667
        %v682 = vpack.c.bf16 %v670, %v669
        %v683 = vpack.c.bf16 %v672, %v671
        %v684 = vpack.c.bf16 %v674, %v673
        %v685 = vpack.c.bf16 %v676, %v675
        %v686 = vpack.c.bf16 %v678, %v677
        %v687 = vpack.c.bf16 %v680, %v679
        %v695 = vunpack.c.l.b16 %v681
        %v696 = vunpack.c.h.b16 %v681
        %v697 = vunpack.c.l.b16 %v682
        %v698 = vunpack.c.h.b16 %v682
        %v699 = vunpack.c.l.b16 %v683
        %v700 = vunpack.c.h.b16 %v683
        %v701 = vunpack.c.l.b16 %v684
        %v702 = vunpack.c.h.b16 %v684
        %v703 = vunpack.c.l.b16 %v685
        %v704 = vunpack.c.h.b16 %v685
        %v705 = vunpack.c.l.b16 %v686
        %v706 = vunpack.c.h.b16 %v686
        %v707 = vunpack.c.l.b16 %v687
        %v708 = vunpack.c.h.b16 %v687
        %v709 = vpack.c.b16 %v695, %v695
        %v710 = vpack.c.b16 %v696, %v696
        %v711 = vpack.c.b16 %v697, %v697
        %v712 = vpack.c.b16 %v698, %v698
        %v713 = vpack.c.b16 %v699, %v699
        %v714 = vpack.c.b16 %v700, %v700
        %v715 = vpack.c.b16 %v701, %v701
        %v716 = vpack.c.b16 %v702, %v702
        %v717 = vpack.c.b16 %v703, %v703
        %v718 = vpack.c.b16 %v704, %v704
        %v719 = vpack.c.b16 %v705, %v705
        %v720 = vpack.c.b16 %v706, %v706
        %v721 = vpack.c.b16 %v707, %v707
        %v722 = vpack.c.b16 %v708, %v708
        %737 = vst [vmem:[%s265] sm:$0xf] %v709
        %738 = vst [vmem:[%s265 + $0x4] sm:$0xf] %v710
        %739 = vst [vmem:[%s265 + $0x8] sm:$0xf] %v711
        %740 = vst [vmem:[%s265 + $0xc] sm:$0xf] %v712
        %741 = vst [vmem:[%s265 + $0x10] sm:$0xf] %v713
        %742 = vst [vmem:[%s265 + $0x14] sm:$0xf] %v714
        %743 = vst [vmem:[%s265 + $0x18] sm:$0xf] %v715
        %744 = vst [vmem:[%s265 + $0x1c] sm:$0xf] %v716
        %745 = vst [vmem:[%s265 + $0x20] sm:$0xf] %v717
        %746 = vst [vmem:[%s265 + $0x24] sm:$0xf] %v718
        %747 = vst [vmem:[%s265 + $0x28] sm:$0xf] %v719
        %748 = vst [vmem:[%s265 + $0x2c] sm:$0xf] %v720
        %749 = vst [vmem:[%s265 + $0x30] sm:$0xf] %v721
        %750 = vst [vmem:[%s265 + $0x34] sm:$0xf] %v722
      $region40: #{dqn_forward.4} parent=31 // pred_fallthru
        _
      %s751 = smul.u32 14, %s19
      %p752 = scmp.lt.s32.totalorder %s751, 27
      %s753 = scalar_select %p752, %s751, 27
      %p754 = scmp.lt.s32.totalorder %s20, 0
      %s755 = scalar_select %p754, %s20, 0
      %s756 = sadd.s32 %s755, %s753
      %s757 = smul.addr %s756, 4
      %s758 = scalar_lea.vmem %s3, %s757
      // Predicated region
      $region41: #{dqn_forward.4} parent=31 // pred_check
        %p759 = pneg %p135
      $region42: #{dqn_forward.4} parent=31 // pred_check_branch
        %761 = sbr.rel (%p759) target = $region44
      $region43: #{dqn_forward.4} parent=31 // pred_region
        %s762 = smul.u32 14, %s19
      $region44: #{dqn_forward.4} parent=31 // pred_fallthru
        _
    $region32: #{dqn_forward.4} parent=5 // pred_fallthru
      _
    %p763 = scmp.le.s32.totalorder 2, %s9
    // Predicated region
    $region45: #{dqn_forward.4} parent=5 // pred_check
      %p764 = pneg %p763
    $region46: #{dqn_forward.4} parent=5 // pred_check_branch
      %766 = sbr.rel (%p764) target = $region48
    $region47: #{dqn_forward.4} parent=5 // pred_region
      %s767 = ssub.s32 %s9, 2
      // Predicated region
      $region49: #{dqn_forward.4} parent=47 // pred_check
        %p768 = pneg %p141
      $region50: #{dqn_forward.4} parent=47 // pred_check_branch
        %770 = sbr.rel (%p768) target = $region52
      $region51: #{dqn_forward.4} parent=47 // pred_region
        %s771 = smul.u32 14, %s22
        %p772 = scmp.lt.s32.totalorder %s771, 27
        %s773 = scalar_select %p772, %s771, 27
        %p774 = scmp.lt.s32.totalorder %s23, 0
        %s775 = scalar_select %p774, %s23, 0
        %s776 = sadd.s32 %s775, %s773
        %s777 = smul.addr %s776, 4
        %s778 = scalar_lea.vmem %s3, %s777
      $region52: #{dqn_forward.4} parent=47 // pred_fallthru
        _
    $region48: #{dqn_forward.4} parent=5 // pred_fallthru
      _
  $region6: #{dqn_forward.4} parent=0 // loop_footer
    %s13 = sadd.s32 1, %s9
  $region7: #{dqn_forward.4} parent=0 // loop_footer_branch
    %8 = sbr.rel target = $region3
  $region8: #{dqn_forward.4} parent=0 // loop_exit
    _

// kernel: dqn_forward.5
$region0: #{dqn_forward.5}
  #allocation0 [shape = 'u32[]', space=smem, size = 0x4, offset = 0x4, fixed_abs, tag = 'smem constant byte address 0x4 - core index']
  #allocation1 [shape = 'u32[144,128]{1,0:T(1,128)}', space=vmem, size = 0x12000, scoped, tag = 'internal scratch']
  #allocation2 [shape = 'f32[32,128]{1,0:T(8,128)}', space=vmem, size = 0x4000, scoped, tag = 'scratch operand']
  %s0 = inlined_call_operand.vmem [shape: bf16[32,512], index: 0, kind: input, shape index: {}]
  %s1 = inlined_call_operand.vmem [shape: bf16[512,128], index: 1, kind: input, shape index: {}]
  %s2 = inlined_call_operand.vmem [shape: f32[1,128], index: 2, kind: input, shape index: {}]
  %s3 = inlined_call_operand.vmem [shape: bf16[32,128], index: 3, kind: output, shape index: {}]
  %s4 = sld [smem:[#allocation0]]
  $region30: #{dqn_forward.5} parent=0
    _
  %s6 = ssub.s32 1, %s4
  %s7 = scalar_select 0, %s6, %s4
  // Predicated region
  $region2: #{dqn_forward.5} parent=0 // pred_check
    _
  $region3: #{dqn_forward.5} parent=0 // pred_check_branch
    %9 = sbr.rel (0) target = $region5
  $region4: #{dqn_forward.5} parent=0 // pred_region
    _
  $region5: #{dqn_forward.5} parent=0 // pred_fallthru
    _
  // Predicated region
  $region6: #{dqn_forward.5} parent=0 // pred_check
    _
  $region7: #{dqn_forward.5} parent=0 // pred_check_branch
    %11 = sbr.rel (0) target = $region9
  $region8: #{dqn_forward.5} parent=0 // pred_region
    _
  $region9: #{dqn_forward.5} parent=0 // pred_fallthru
    _
  // Predicated region
  $region10: #{dqn_forward.5} parent=0 // pred_check
    _
  $region11: #{dqn_forward.5} parent=0 // pred_check_branch
    %13 = sbr.rel (0) target = $region13
  $region12: #{dqn_forward.5} parent=0 // pred_region
    _
  $region13: #{dqn_forward.5} parent=0 // pred_fallthru
    _
  %p15 = scmp.eq.s32.totalorder 0, 0
  // Predicated region
  $region14: #{dqn_forward.5} parent=0 // pred_check
    %p16 = pneg %p15
  $region15: #{dqn_forward.5} parent=0 // pred_check_branch
    %18 = sbr.rel (%p16) target = $region17
  $region16: #{dqn_forward.5} parent=0 // pred_region
    %19 = vst [vmem:[#allocation2] sm:$0xff] 0.0
    %20 = vst [vmem:[#allocation2 + $0x8] sm:$0xff] 0.0
    %21 = vst [vmem:[#allocation2 + $0x10] sm:$0xff] 0.0
    %22 = vst [vmem:[#allocation2 + $0x18] sm:$0xff] 0.0
  $region17: #{dqn_forward.5} parent=0 // pred_fallthru
    _
  %v23 = vld [vmem:[#allocation2] sm:$0xff]
  %v24 = vld [vmem:[#allocation2 + $0x8] sm:$0xff]
  %v25 = vld [vmem:[#allocation2 + $0x10] sm:$0xff]
  %v26 = vld [vmem:[#allocation2 + $0x18] sm:$0xff]
  %v27 = vld [vmem:[%s0] sm:$0xff]
  %v28 = vld [vmem:[%s0 + $0x8] sm:$0xff]
  %v29 = vld [vmem:[%s0 + $0x10] sm:$0xff]
  %v30 = vld [vmem:[%s0 + $0x18] sm:$0xff]
  %v31 = vld [vmem:[%s0 + $0x20] sm:$0xff]
  %v32 = vld [vmem:[%s0 + $0x28] sm:$0xff]
  %v33 = vld [vmem:[%s0 + $0x30] sm:$0xff]
  %v34 = vld [vmem:[%s0 + $0x38] sm:$0xff]
  %v35 = vld [vmem:[%s1] sm:$0xf]
  %v36 = vld [vmem:[%s1 + $0x4] sm:$0xf]
  %v37 = vld [vmem:[%s1 + $0x8] sm:$0xf]
  %v38 = vld [vmem:[%s1 + $0xc] sm:$0xf]
  %v39 = vld [vmem:[%s1 + $0x10] sm:$0xf]
  %v40 = vld [vmem:[%s1 + $0x14] sm:$0xf]
  %v41 = vld [vmem:[%s1 + $0x18] sm:$0xf]
  %v42 = vld [vmem:[%s1 + $0x1c] sm:$0xf]
  %v43 = vld [vmem:[%s1 + $0x20] sm:$0xf]
  %v44 = vld [vmem:[%s1 + $0x24] sm:$0xf]
  %v45 = vld [vmem:[%s1 + $0x28] sm:$0xf]
  %v46 = vld [vmem:[%s1 + $0x2c] sm:$0xf]
  %v47 = vld [vmem:[%s1 + $0x30] sm:$0xf]
  %v48 = vld [vmem:[%s1 + $0x34] sm:$0xf]
  %v49 = vld [vmem:[%s1 + $0x38] sm:$0xf]
  %v50 = vld [vmem:[%s1 + $0x3c] sm:$0xf]
  %v51 = vld [vmem:[%s1 + $0x40] sm:$0xf]
  %v52 = vld [vmem:[%s1 + $0x44] sm:$0xf]
  %v53 = vld [vmem:[%s1 + $0x48] sm:$0xf]
  %v54 = vld [vmem:[%s1 + $0x4c] sm:$0xf]
  %v55 = vld [vmem:[%s1 + $0x50] sm:$0xf]
  %v56 = vld [vmem:[%s1 + $0x54] sm:$0xf]
  %v57 = vld [vmem:[%s1 + $0x58] sm:$0xf]
  %v58 = vld [vmem:[%s1 + $0x5c] sm:$0xf]
  %v59 = vld [vmem:[%s1 + $0x60] sm:$0xf]
  %v60 = vld [vmem:[%s1 + $0x64] sm:$0xf]
  %v61 = vld [vmem:[%s1 + $0x68] sm:$0xf]
  %v62 = vld [vmem:[%s1 + $0x6c] sm:$0xf]
  %v63 = vld [vmem:[%s1 + $0x70] sm:$0xf]
  %v64 = vld [vmem:[%s1 + $0x74] sm:$0xf]
  %v65 = vld [vmem:[%s1 + $0x78] sm:$0xf]
  %v66 = vld [vmem:[%s1 + $0x7c] sm:$0xf]
  %v67 = vld [vmem:[%s1 + $0x80] sm:$0xf]
  %v68 = vld [vmem:[%s1 + $0x84] sm:$0xf]
  %v69 = vld [vmem:[%s1 + $0x88] sm:$0xf]
  %v70 = vld [vmem:[%s1 + $0x8c] sm:$0xf]
  %v71 = vld [vmem:[%s1 + $0x90] sm:$0xf]
  %v72 = vld [vmem:[%s1 + $0x94] sm:$0xf]
  %v73 = vld [vmem:[%s1 + $0x98] sm:$0xf]
  %v74 = vld [vmem:[%s1 + $0x9c] sm:$0xf]
  %v75 = vld [vmem:[%s1 + $0xa0] sm:$0xf]
  %v76 = vld [vmem:[%s1 + $0xa4] sm:$0xf]
  %v77 = vld [vmem:[%s1 + $0xa8] sm:$0xf]
  %v78 = vld [vmem:[%s1 + $0xac] sm:$0xf]
  %v79 = vld [vmem:[%s1 + $0xb0] sm:$0xf]
  %v80 = vld [vmem:[%s1 + $0xb4] sm:$0xf]
  %v81 = vld [vmem:[%s1 + $0xb8] sm:$0xf]
  %v82 = vld [vmem:[%s1 + $0xbc] sm:$0xf]
  %v83 = vld [vmem:[%s1 + $0xc0] sm:$0xf]
  %v84 = vld [vmem:[%s1 + $0xc4] sm:$0xf]
  %v85 = vld [vmem:[%s1 + $0xc8] sm:$0xf]
  %v86 = vld [vmem:[%s1 + $0xcc] sm:$0xf]
  %v87 = vld [vmem:[%s1 + $0xd0] sm:$0xf]
  %v88 = vld [vmem:[%s1 + $0xd4] sm:$0xf]
  %v89 = vld [vmem:[%s1 + $0xd8] sm:$0xf]
  %v90 = vld [vmem:[%s1 + $0xdc] sm:$0xf]
  %v91 = vld [vmem:[%s1 + $0xe0] sm:$0xf]
  %v92 = vld [vmem:[%s1 + $0xe4] sm:$0xf]
  %v93 = vld [vmem:[%s1 + $0xe8] sm:$0xf]
  %v94 = vld [vmem:[%s1 + $0xec] sm:$0xf]
  %v95 = vld [vmem:[%s1 + $0xf0] sm:$0xf]
  %v96 = vld [vmem:[%s1 + $0xf4] sm:$0xf]
  %v97 = vld [vmem:[%s1 + $0xf8] sm:$0xf]
  %v98 = vld [vmem:[%s1 + $0xfc] sm:$0xf]
  %v107 = vunpack.c.l.b16 %v27
  %v108 = vunpack.c.h.b16 %v27
  %v109 = vunpack.c.l.b16 %v28
  %v110 = vunpack.c.h.b16 %v28
  %v111 = vunpack.c.l.b16 %v29
  %v112 = vunpack.c.h.b16 %v29
  %v113 = vunpack.c.l.b16 %v30
  %v114 = vunpack.c.h.b16 %v30
  %v115 = vunpack.c.l.b16 %v31
  %v116 = vunpack.c.h.b16 %v31
  %v117 = vunpack.c.l.b16 %v32
  %v118 = vunpack.c.h.b16 %v32
  %v119 = vunpack.c.l.b16 %v33
  %v120 = vunpack.c.h.b16 %v33
  %v121 = vunpack.c.l.b16 %v34
  %v122 = vunpack.c.h.b16 %v34
  %v123 = vpack.c.b16 %v111, %v107
  %v124 = vpack.c.b16 %v112, %v108
  %v125 = vpack.c.b16 %v113, %v109
  %v126 = vpack.c.b16 %v114, %v110
  %v127 = vpack.c.b16 %v119, %v115
  %v128 = vpack.c.b16 %v120, %v116
  %v129 = vpack.c.b16 %v121, %v117
  %v130 = vpack.c.b16 %v122, %v118
  %v203 = vunpack.c.l.b16 %v35
  %v204 = vunpack.c.l.b16 %v36
  %v205 = vunpack.c.l.b16 %v37
  %v206 = vunpack.c.l.b16 %v38
  %v207 = vunpack.c.l.b16 %v39
  %v208 = vunpack.c.l.b16 %v40
  %v209 = vunpack.c.l.b16 %v41
  %v210 = vunpack.c.l.b16 %v42
  %v211 = vunpack.c.l.b16 %v43
  %v212 = vunpack.c.l.b16 %v44
  %v213 = vunpack.c.l.b16 %v45
  %v214 = vunpack.c.l.b16 %v46
  %v215 = vunpack.c.l.b16 %v47
  %v216 = vunpack.c.l.b16 %v48
  %v217 = vunpack.c.l.b16 %v49
  %v218 = vunpack.c.l.b16 %v50
  %v219 = vunpack.c.l.b16 %v51
  %v220 = vunpack.c.l.b16 %v52
  %v221 = vunpack.c.l.b16 %v53
  %v222 = vunpack.c.l.b16 %v54
  %v223 = vunpack.c.l.b16 %v55
  %v224 = vunpack.c.l.b16 %v56
  %v225 = vunpack.c.l.b16 %v57
  %v226 = vunpack.c.l.b16 %v58
  %v227 = vunpack.c.l.b16 %v59
  %v228 = vunpack.c.l.b16 %v60
  %v229 = vunpack.c.l.b16 %v61
  %v230 = vunpack.c.l.b16 %v62
  %v231 = vunpack.c.l.b16 %v63
  %v232 = vunpack.c.l.b16 %v64
  %v233 = vunpack.c.l.b16 %v65
  %v234 = vunpack.c.l.b16 %v66
  %v235 = vunpack.c.l.b16 %v67
  %v236 = vunpack.c.l.b16 %v68
  %v237 = vunpack.c.l.b16 %v69
  %v238 = vunpack.c.l.b16 %v70
  %v239 = vunpack.c.l.b16 %v71
  %v240 = vunpack.c.l.b16 %v72
  %v241 = vunpack.c.l.b16 %v73
  %v242 = vunpack.c.l.b16 %v74
  %v243 = vunpack.c.l.b16 %v75
  %v244 = vunpack.c.l.b16 %v76
  %v245 = vunpack.c.l.b16 %v77
  %v246 = vunpack.c.l.b16 %v78
  %v247 = vunpack.c.l.b16 %v79
  %v248 = vunpack.c.l.b16 %v80
  %v249 = vunpack.c.l.b16 %v81
  %v250 = vunpack.c.l.b16 %v82
  %v251 = vunpack.c.l.b16 %v83
  %v252 = vunpack.c.l.b16 %v84
  %v253 = vunpack.c.l.b16 %v85
  %v254 = vunpack.c.l.b16 %v86
  %v255 = vunpack.c.l.b16 %v87
  %v256 = vunpack.c.l.b16 %v88
  %v257 = vunpack.c.l.b16 %v89
  %v258 = vunpack.c.l.b16 %v90
  %v259 = vunpack.c.l.b16 %v91
  %v260 = vunpack.c.l.b16 %v92
  %v261 = vunpack.c.l.b16 %v93
  %v262 = vunpack.c.l.b16 %v94
  %v263 = vunpack.c.l.b16 %v95
  %v264 = vunpack.c.l.b16 %v96
  %v265 = vunpack.c.l.b16 %v97
  %v266 = vunpack.c.l.b16 %v98
  %v267 = vpack.c.b16 %v204, %v203
  %v268 = vpack.c.b16 %v206, %v205
  %v269 = vpack.c.b16 %v208, %v207
  %v270 = vpack.c.b16 %v210, %v209
  %v271 = vpack.c.b16 %v212, %v211
  %v272 = vpack.c.b16 %v214, %v213
  %v273 = vpack.c.b16 %v216, %v215
  %v274 = vpack.c.b16 %v218, %v217
  %v275 = vpack.c.b16 %v220, %v219
  %v276 = vpack.c.b16 %v222, %v221
  %v277 = vpack.c.b16 %v224, %v223
  %v278 = vpack.c.b16 %v226, %v225
  %v279 = vpack.c.b16 %v228, %v227
  %v280 = vpack.c.b16 %v230, %v229
  %v281 = vpack.c.b16 %v232, %v231
  %v282 = vpack.c.b16 %v234, %v233
  %v283 = vpack.c.b16 %v236, %v235
  %v284 = vpack.c.b16 %v238, %v237
  %v285 = vpack.c.b16 %v240, %v239
  %v286 = vpack.c.b16 %v242, %v241
  %v287 = vpack.c.b16 %v244, %v243
  %v288 = vpack.c.b16 %v246, %v245
  %v289 = vpack.c.b16 %v248, %v247
  %v290 = vpack.c.b16 %v250, %v249
  %v291 = vpack.c.b16 %v252, %v251
  %v292 = vpack.c.b16 %v254, %v253
  %v293 = vpack.c.b16 %v256, %v255
  %v294 = vpack.c.b16 %v258, %v257
  %v295 = vpack.c.b16 %v260, %v259
  %v296 = vpack.c.b16 %v262, %v261
  %v297 = vpack.c.b16 %v264, %v263
  %v298 = vpack.c.b16 %v266, %v265
  %331 = vmatprep.subr.bf16.mxu0 0
  %332 = vmatpush1.bf16.msra.mxu0 %v267
  %333 = vmatprep.subr.bf16.mxu0 0
  %334 = vmatpush1.bf16.msra.mxu0 %v268
  %335 = vmatprep.subr.bf16.mxu0 0
  %336 = vmatpush1.bf16.msra.mxu0 %v269
  %337 = vmatprep.subr.bf16.mxu0 0
  %338 = vmatpush1.bf16.msra.mxu0 %v270
  %339 = vmatprep.subr.bf16.mxu0 0
  %340 = vmatpush1.bf16.msra.mxu0 %v271
  %341 = vmatprep.subr.bf16.mxu0 0
  %342 = vmatpush1.bf16.msra.mxu0 %v272
  %343 = vmatprep.subr.bf16.mxu0 0
  %344 = vmatpush1.bf16.msra.mxu0 %v273
  %345 = vmatprep.subr.bf16.mxu0 0
  %346 = vmatpush1.bf16.msra.mxu0 %v274
  %347 = vmatprep.subr.bf16.mxu0 0
  %348 = vmatpush1.bf16.msra.mxu0 %v275
  %349 = vmatprep.subr.bf16.mxu0 0
  %350 = vmatpush1.bf16.msra.mxu0 %v276
  %351 = vmatprep.subr.bf16.mxu0 0
  %352 = vmatpush1.bf16.msra.mxu0 %v277
  %353 = vmatprep.subr.bf16.mxu0 0
  %354 = vmatpush1.bf16.msra.mxu0 %v278
  %355 = vmatprep.subr.bf16.mxu0 0
  %356 = vmatpush1.bf16.msra.mxu0 %v279
  %357 = vmatprep.subr.bf16.mxu0 0
  %358 = vmatpush1.bf16.msra.mxu0 %v280
  %359 = vmatprep.subr.bf16.mxu0 0
  %360 = vmatpush1.bf16.msra.mxu0 %v281
  %361 = vmatprep.subr.bf16.mxu0 0
  %362 = vmatpush1.bf16.msra.mxu0 %v282
  %363 = vmatprep.mubr.bf16.mxu0 %v124
  %364 = vmatmul.mubr.bf16.gmra.mrb[0].mxu0 %v123
  %v365 = vpop.f32.mrb[0].mxu0
  %v366 = vadd.f32 0.0, %v365
  %v367 = vpop.f32.mrb[0].mxu0
  %v368 = vpop.f32.mrb[0].mxu0
  %v369 = vadd.f32 0.0, %v368
  %v370 = vpop.f32.mrb[0].mxu0
  %371 = vmatprep.mubr.bf16.mxu0 %v128
  %372 = vmatmul.mubr.bf16.gmra.mrb[0].mxu0 %v127
  %v373 = vpop.f32.mrb[0].mxu0
  %v374 = vadd.f32 0.0, %v373
  %v375 = vpop.f32.mrb[0].mxu0
  %v376 = vpop.f32.mrb[0].mxu0
  %v377 = vadd.f32 0.0, %v376
  %v378 = vpop.f32.mrb[0].mxu0
  %379 = vdwg.mxu0
  %380 = vmatprep.subr.bf16.mxu0 0
  %381 = vmatpush1.bf16.msra.mxu0 %v283
  %382 = vmatprep.subr.bf16.mxu0 0
  %383 = vmatpush1.bf16.msra.mxu0 %v284
  %384 = vmatprep.subr.bf16.mxu0 0
  %385 = vmatpush1.bf16.msra.mxu0 %v285
  %386 = vmatprep.subr.bf16.mxu0 0
  %387 = vmatpush1.bf16.msra.mxu0 %v286
  %388 = vmatprep.subr.bf16.mxu0 0
  %389 = vmatpush1.bf16.msra.mxu0 %v287
  %390 = vmatprep.subr.bf16.mxu0 0
  %391 = vmatpush1.bf16.msra.mxu0 %v288
  %392 = vmatprep.subr.bf16.mxu0 0
  %393 = vmatpush1.bf16.msra.mxu0 %v289
  %394 = vmatprep.subr.bf16.mxu0 0
  %395 = vmatpush1.bf16.msra.mxu0 %v290
  %396 = vmatprep.subr.bf16.mxu0 0
  %397 = vmatpush1.bf16.msra.mxu0 %v291
  %398 = vmatprep.subr.bf16.mxu0 0
  %399 = vmatpush1.bf16.msra.mxu0 %v292
  %400 = vmatprep.subr.bf16.mxu0 0
  %401 = vmatpush1.bf16.msra.mxu0 %v293
  %402 = vmatprep.subr.bf16.mxu0 0
  %403 = vmatpush1.bf16.msra.mxu0 %v294
  %404 = vmatprep.subr.bf16.mxu0 0
  %405 = vmatpush1.bf16.msra.mxu0 %v295
  %406 = vmatprep.subr.bf16.mxu0 0
  %407 = vmatpush1.bf16.msra.mxu0 %v296
  %408 = vmatprep.subr.bf16.mxu0 0
  %409 = vmatpush1.bf16.msra.mxu0 %v297
  %410 = vmatprep.subr.bf16.mxu0 0
  %411 = vmatpush1.bf16.msra.mxu0 %v298
  %412 = vmatprep.mubr.bf16.mxu0 %v126
  %413 = vmatmul.mubr.bf16.gmra.mrb[0].mxu0 %v125
  %v414 = vpop.f32.mrb[0].mxu0
  %v415 = vadd.f32 %v366, %v414
  %v416 = vpop.f32.mrb[0].mxu0
  %v417 = vpop.f32.mrb[0].mxu0
  %v418 = vadd.f32 %v369, %v417
  %v419 = vpop.f32.mrb[0].mxu0
  %420 = vmatprep.mubr.bf16.mxu0 %v130
  %421 = vmatmul.mubr.bf16.gmra.mrb[0].mxu0 %v129
  %v422 = vpop.f32.mrb[0].mxu0
  %v423 = vadd.f32 %v374, %v422
  %v424 = vpop.f32.mrb[0].mxu0
  %v425 = vpop.f32.mrb[0].mxu0
  %v426 = vadd.f32 %v377, %v425
  %v427 = vpop.f32.mrb[0].mxu0
  %428 = vdwg.mxu0
  %v429 = vadd.f32 %v23, %v415
  %v430 = vadd.f32 %v24, %v418
  %v431 = vadd.f32 %v25, %v423
  %v432 = vadd.f32 %v26, %v426
  %433 = vst [vmem:[#allocation2] sm:$0xff] %v429
  %434 = vst [vmem:[#allocation2 + $0x8] sm:$0xff] %v430
  %435 = vst [vmem:[#allocation2 + $0x10] sm:$0xff] %v431
  %436 = vst [vmem:[#allocation2 + $0x18] sm:$0xff] %v432
  // Predicated region
  $region18: #{dqn_forward.5} parent=0 // pred_check
    %p437 = pneg %p15
  $region19: #{dqn_forward.5} parent=0 // pred_check_branch
    %439 = sbr.rel (%p437) target = $region21
  $region20: #{dqn_forward.5} parent=0 // pred_region
    %v440 = vld [vmem:[#allocation2] sm:$0xff]
    %v441 = vld [vmem:[#allocation2 + $0x8] sm:$0xff]
    %v442 = vld [vmem:[#allocation2 + $0x10] sm:$0xff]
    %v443 = vld [vmem:[#allocation2 + $0x18] sm:$0xff]
    %v444 = vld [vmem:[%s2] sm:$0x1]
    %v446 = vlaneseq
    %v447 = vshrl.u32 %v446, 7
    %v448 = vsub.s32 0, %v447
    %v449 = vrot.slane %v444, %v448
    %v451 = vadd.f32 %v440, %v449
    %v452 = vadd.f32 %v441, %v449
    %v453 = vadd.f32 %v442, %v449
    %v454 = vadd.f32 %v443, %v449
    %v455 = vmax.f32 %v451, 0.0
    %v456 = vmax.f32 %v452, 0.0
    %v457 = vmax.f32 %v453, 0.0
    %v458 = vmax.f32 %v454, 0.0
    %v459 = vpack.c.bf16 %v456, %v455
    %v460 = vpack.c.bf16 %v458, %v457
    %v463 = vunpack.c.l.b16 %v459
    %v464 = vunpack.c.h.b16 %v459
    %v465 = vunpack.c.l.b16 %v460
    %v466 = vunpack.c.h.b16 %v460
    %v467 = vpack.c.b16 %v463, %v463
    %v468 = vpack.c.b16 %v464, %v464
    %v469 = vpack.c.b16 %v465, %v465
    %v470 = vpack.c.b16 %v466, %v466
    %475 = vst [vmem:[%s3] sm:$0xf] %v467
    %476 = vst [vmem:[%s3 + $0x4] sm:$0xf] %v468
    %477 = vst [vmem:[%s3 + $0x8] sm:$0xf] %v469
    %478 = vst [vmem:[%s3 + $0xc] sm:$0xf] %v470
  $region21: #{dqn_forward.5} parent=0 // pred_fallthru
    _
  // Predicated region
  $region22: #{dqn_forward.5} parent=0 // pred_check
    _
  $region23: #{dqn_forward.5} parent=0 // pred_check_branch
    %480 = sbr.rel (0) target = $region25
  $region24: #{dqn_forward.5} parent=0 // pred_region
    _
  $region25: #{dqn_forward.5} parent=0 // pred_fallthru
    _
  // Predicated region
  $region26: #{dqn_forward.5} parent=0 // pred_check
    _
  $region27: #{dqn_forward.5} parent=0 // pred_check_branch
    %482 = sbr.rel (0) target = $region29
  $region28: #{dqn_forward.5} parent=0 // pred_region
    _
  $region29: #{dqn_forward.5} parent=0 // pred_fallthru
    _

// kernel: dqn_forward.6
$region0: #{dqn_forward.6}
  #allocation0 [shape = 'u32[]', space=smem, size = 0x4, offset = 0x4, fixed_abs, tag = 'smem constant byte address 0x4 - core index']
  #allocation1 [shape = 'u32[144,128]{1,0:T(1,128)}', space=vmem, size = 0x12000, scoped, tag = 'internal scratch']
  #allocation2 [shape = 'f32[16,128]{1,0:T(8,128)}', space=vmem, size = 0x2000, scoped, tag = 'scratch operand']
  %s0 = inlined_call_operand.vmem [shape: bf16[16,640], index: 0, kind: input, shape index: {}]
  %s1 = inlined_call_operand.vmem [shape: bf16[640,128], index: 1, kind: input, shape index: {}]
  %s2 = inlined_call_operand.vmem [shape: f32[1,128], index: 2, kind: input, shape index: {}]
  %s3 = inlined_call_operand.vmem [shape: bf16[16,128], index: 3, kind: output, shape index: {}]
  %s4 = sld [smem:[#allocation0]]
  $region30: #{dqn_forward.6} parent=0
    _
  %s6 = ssub.s32 1, %s4
  %s7 = scalar_select 0, %s6, %s4
  // Predicated region
  $region2: #{dqn_forward.6} parent=0 // pred_check
    _
  $region3: #{dqn_forward.6} parent=0 // pred_check_branch
    %9 = sbr.rel (0) target = $region5
  $region4: #{dqn_forward.6} parent=0 // pred_region
    _
  $region5: #{dqn_forward.6} parent=0 // pred_fallthru
    _
  // Predicated region
  $region6: #{dqn_forward.6} parent=0 // pred_check
    _
  $region7: #{dqn_forward.6} parent=0 // pred_check_branch
    %11 = sbr.rel (0) target = $region9
  $region8: #{dqn_forward.6} parent=0 // pred_region
    _
  $region9: #{dqn_forward.6} parent=0 // pred_fallthru
    _
  // Predicated region
  $region10: #{dqn_forward.6} parent=0 // pred_check
    _
  $region11: #{dqn_forward.6} parent=0 // pred_check_branch
    %13 = sbr.rel (0) target = $region13
  $region12: #{dqn_forward.6} parent=0 // pred_region
    _
  $region13: #{dqn_forward.6} parent=0 // pred_fallthru
    _
  %p15 = scmp.eq.s32.totalorder 0, 0
  // Predicated region
  $region14: #{dqn_forward.6} parent=0 // pred_check
    %p16 = pneg %p15
  $region15: #{dqn_forward.6} parent=0 // pred_check_branch
    %18 = sbr.rel (%p16) target = $region17
  $region16: #{dqn_forward.6} parent=0 // pred_region
    %19 = vst [vmem:[#allocation2] sm:$0xff] 0.0
    %20 = vst [vmem:[#allocation2 + $0x8] sm:$0xff] 0.0
  $region17: #{dqn_forward.6} parent=0 // pred_fallthru
    _
  %v21 = vld [vmem:[#allocation2] sm:$0xff]
  %v22 = vld [vmem:[#allocation2 + $0x8] sm:$0xff]
  %v23 = vld [vmem:[%s0] sm:$0xff]
  %v24 = vld [vmem:[%s0 + $0x8] sm:$0xff]
  %v25 = vld [vmem:[%s0 + $0x10] sm:$0xf]
  %v26 = vld [vmem:[%s0 + $0x14] sm:$0xff]
  %v27 = vld [vmem:[%s0 + $0x1c] sm:$0xff]
  %v28 = vld [vmem:[%s0 + $0x24] sm:$0xf]
  %v29 = vld [vmem:[%s1] sm:$0xf]
  %v30 = vld [vmem:[%s1 + $0x4] sm:$0xf]
  %v31 = vld [vmem:[%s1 + $0x8] sm:$0xf]
  %v32 = vld [vmem:[%s1 + $0xc] sm:$0xf]
  %v33 = vld [vmem:[%s1 + $0x10] sm:$0xf]
  %v34 = vld [vmem:[%s1 + $0x14] sm:$0xf]
  %v35 = vld [vmem:[%s1 + $0x18] sm:$0xf]
  %v36 = vld [vmem:[%s1 + $0x1c] sm:$0xf]
  %v37 = vld [vmem:[%s1 + $0x20] sm:$0xf]
  %v38 = vld [vmem:[%s1 + $0x24] sm:$0xf]
  %v39 = vld [vmem:[%s1 + $0x28] sm:$0xf]
  %v40 = vld [vmem:[%s1 + $0x2c] sm:$0xf]
  %v41 = vld [vmem:[%s1 + $0x30] sm:$0xf]
  %v42 = vld [vmem:[%s1 + $0x34] sm:$0xf]
  %v43 = vld [vmem:[%s1 + $0x38] sm:$0xf]
  %v44 = vld [vmem:[%s1 + $0x3c] sm:$0xf]
  %v45 = vld [vmem:[%s1 + $0x40] sm:$0xf]
  %v46 = vld [vmem:[%s1 + $0x44] sm:$0xf]
  %v47 = vld [vmem:[%s1 + $0x48] sm:$0xf]
  %v48 = vld [vmem:[%s1 + $0x4c] sm:$0xf]
  %v49 = vld [vmem:[%s1 + $0x50] sm:$0xf]
  %v50 = vld [vmem:[%s1 + $0x54] sm:$0xf]
  %v51 = vld [vmem:[%s1 + $0x58] sm:$0xf]
  %v52 = vld [vmem:[%s1 + $0x5c] sm:$0xf]
  %v53 = vld [vmem:[%s1 + $0x60] sm:$0xf]
  %v54 = vld [vmem:[%s1 + $0x64] sm:$0xf]
  %v55 = vld [vmem:[%s1 + $0x68] sm:$0xf]
  %v56 = vld [vmem:[%s1 + $0x6c] sm:$0xf]
  %v57 = vld [vmem:[%s1 + $0x70] sm:$0xf]
  %v58 = vld [vmem:[%s1 + $0x74] sm:$0xf]
  %v59 = vld [vmem:[%s1 + $0x78] sm:$0xf]
  %v60 = vld [vmem:[%s1 + $0x7c] sm:$0xf]
  %v61 = vld [vmem:[%s1 + $0x80] sm:$0xf]
  %v62 = vld [vmem:[%s1 + $0x84] sm:$0xf]
  %v63 = vld [vmem:[%s1 + $0x88] sm:$0xf]
  %v64 = vld [vmem:[%s1 + $0x8c] sm:$0xf]
  %v65 = vld [vmem:[%s1 + $0x90] sm:$0xf]
  %v66 = vld [vmem:[%s1 + $0x94] sm:$0xf]
  %v67 = vld [vmem:[%s1 + $0x98] sm:$0xf]
  %v68 = vld [vmem:[%s1 + $0x9c] sm:$0xf]
  %v69 = vld [vmem:[%s1 + $0xa0] sm:$0xf]
  %v70 = vld [vmem:[%s1 + $0xa4] sm:$0xf]
  %v71 = vld [vmem:[%s1 + $0xa8] sm:$0xf]
  %v72 = vld [vmem:[%s1 + $0xac] sm:$0xf]
  %v73 = vld [vmem:[%s1 + $0xb0] sm:$0xf]
  %v74 = vld [vmem:[%s1 + $0xb4] sm:$0xf]
  %v75 = vld [vmem:[%s1 + $0xb8] sm:$0xf]
  %v76 = vld [vmem:[%s1 + $0xbc] sm:$0xf]
  %v77 = vld [vmem:[%s1 + $0xc0] sm:$0xf]
  %v78 = vld [vmem:[%s1 + $0xc4] sm:$0xf]
  %v79 = vld [vmem:[%s1 + $0xc8] sm:$0xf]
  %v80 = vld [vmem:[%s1 + $0xcc] sm:$0xf]
  %v81 = vld [vmem:[%s1 + $0xd0] sm:$0xf]
  %v82 = vld [vmem:[%s1 + $0xd4] sm:$0xf]
  %v83 = vld [vmem:[%s1 + $0xd8] sm:$0xf]
  %v84 = vld [vmem:[%s1 + $0xdc] sm:$0xf]
  %v85 = vld [vmem:[%s1 + $0xe0] sm:$0xf]
  %v86 = vld [vmem:[%s1 + $0xe4] sm:$0xf]
  %v87 = vld [vmem:[%s1 + $0xe8] sm:$0xf]
  %v88 = vld [vmem:[%s1 + $0xec] sm:$0xf]
  %v89 = vld [vmem:[%s1 + $0xf0] sm:$0xf]
  %v90 = vld [vmem:[%s1 + $0xf4] sm:$0xf]
  %v91 = vld [vmem:[%s1 + $0xf8] sm:$0xf]
  %v92 = vld [vmem:[%s1 + $0xfc] sm:$0xf]
  %v93 = vld [vmem:[%s1 + $0x100] sm:$0xf]
  %v94 = vld [vmem:[%s1 + $0x104] sm:$0xf]
  %v95 = vld [vmem:[%s1 + $0x108] sm:$0xf]
  %v96 = vld [vmem:[%s1 + $0x10c] sm:$0xf]
  %v97 = vld [vmem:[%s1 + $0x110] sm:$0xf]
  %v98 = vld [vmem:[%s1 + $0x114] sm:$0xf]
  %v99 = vld [vmem:[%s1 + $0x118] sm:$0xf]
  %v100 = vld [vmem:[%s1 + $0x11c] sm:$0xf]
  %v101 = vld [vmem:[%s1 + $0x120] sm:$0xf]
  %v102 = vld [vmem:[%s1 + $0x124] sm:$0xf]
  %v103 = vld [vmem:[%s1 + $0x128] sm:$0xf]
  %v104 = vld [vmem:[%s1 + $0x12c] sm:$0xf]
  %v105 = vld [vmem:[%s1 + $0x130] sm:$0xf]
  %v106 = vld [vmem:[%s1 + $0x134] sm:$0xf]
  %v107 = vld [vmem:[%s1 + $0x138] sm:$0xf]
  %v108 = vld [vmem:[%s1 + $0x13c] sm:$0xf]
  %v115 = vunpack.c.l.b16 %v23
  %v116 = vunpack.c.h.b16 %v23
  %v117 = vunpack.c.l.b16 %v24
  %v118 = vunpack.c.h.b16 %v24
  %v119 = vunpack.c.l.b16 %v25
  %v120 = vunpack.c.l.b16 %v26
  %v121 = vunpack.c.h.b16 %v26
  %v122 = vunpack.c.l.b16 %v27
  %v123 = vunpack.c.h.b16 %v27
  %v124 = vunpack.c.l.b16 %v28
  %v125 = vpack.c.b16 %v120, %v115
  %v126 = vpack.c.b16 %v121, %v116
  %v127 = vpack.c.b16 %v122, %v117
  %v128 = vpack.c.b16 %v123, %v118
  %v129 = vpack.c.b16 %v124, %v119
  %v215 = vunpack.c.l.b16 %v29
  %v216 = vunpack.c.l.b16 %v30
  %v217 = vunpack.c.l.b16 %v31
  %v218 = vunpack.c.l.b16 %v32
  %v219 = vunpack.c.l.b16 %v33
  %v220 = vunpack.c.l.b16 %v34
  %v221 = vunpack.c.l.b16 %v35
  %v222 = vunpack.c.l.b16 %v36
  %v223 = vunpack.c.l.b16 %v37
  %v224 = vunpack.c.l.b16 %v38
  %v225 = vunpack.c.l.b16 %v39
  %v226 = vunpack.c.l.b16 %v40
  %v227 = vunpack.c.l.b16 %v41
  %v228 = vunpack.c.l.b16 %v42
  %v229 = vunpack.c.l.b16 %v43
  %v230 = vunpack.c.l.b16 %v44
  %v231 = vunpack.c.l.b16 %v45
  %v232 = vunpack.c.l.b16 %v46
  %v233 = vunpack.c.l.b16 %v47
  %v234 = vunpack.c.l.b16 %v48
  %v235 = vunpack.c.l.b16 %v49
  %v236 = vunpack.c.l.b16 %v50
  %v237 = vunpack.c.l.b16 %v51
  %v238 = vunpack.c.l.b16 %v52
  %v239 = vunpack.c.l.b16 %v53
  %v240 = vunpack.c.l.b16 %v54
  %v241 = vunpack.c.l.b16 %v55
  %v242 = vunpack.c.l.b16 %v56
  %v243 = vunpack.c.l.b16 %v57
  %v244 = vunpack.c.l.b16 %v58
  %v245 = vunpack.c.l.b16 %v59
  %v246 = vunpack.c.l.b16 %v60
  %v247 = vunpack.c.l.b16 %v61
  %v248 = vunpack.c.l.b16 %v62
  %v249 = vunpack.c.l.b16 %v63
  %v250 = vunpack.c.l.b16 %v64
  %v251 = vunpack.c.l.b16 %v65
  %v252 = vunpack.c.l.b16 %v66
  %v253 = vunpack.c.l.b16 %v67
  %v254 = vunpack.c.l.b16 %v68
  %v255 = vunpack.c.l.b16 %v69
  %v256 = vunpack.c.l.b16 %v70
  %v257 = vunpack.c.l.b16 %v71
  %v258 = vunpack.c.l.b16 %v72
  %v259 = vunpack.c.l.b16 %v73
  %v260 = vunpack.c.l.b16 %v74
  %v261 = vunpack.c.l.b16 %v75
  %v262 = vunpack.c.l.b16 %v76
  %v263 = vunpack.c.l.b16 %v77
  %v264 = vunpack.c.l.b16 %v78
  %v265 = vunpack.c.l.b16 %v79
  %v266 = vunpack.c.l.b16 %v80
  %v267 = vunpack.c.l.b16 %v81
  %v268 = vunpack.c.l.b16 %v82
  %v269 = vunpack.c.l.b16 %v83
  %v270 = vunpack.c.l.b16 %v84
  %v271 = vunpack.c.l.b16 %v85
  %v272 = vunpack.c.l.b16 %v86
  %v273 = vunpack.c.l.b16 %v87
  %v274 = vunpack.c.l.b16 %v88
  %v275 = vunpack.c.l.b16 %v89
  %v276 = vunpack.c.l.b16 %v90
  %v277 = vunpack.c.l.b16 %v91
  %v278 = vunpack.c.l.b16 %v92
  %v279 = vunpack.c.l.b16 %v93
  %v280 = vunpack.c.l.b16 %v94
  %v281 = vunpack.c.l.b16 %v95
  %v282 = vunpack.c.l.b16 %v96
  %v283 = vunpack.c.l.b16 %v97
  %v284 = vunpack.c.l.b16 %v98
  %v285 = vunpack.c.l.b16 %v99
  %v286 = vunpack.c.l.b16 %v100
  %v287 = vunpack.c.l.b16 %v101
  %v288 = vunpack.c.l.b16 %v102
  %v289 = vunpack.c.l.b16 %v103
  %v290 = vunpack.c.l.b16 %v104
  %v291 = vunpack.c.l.b16 %v105
  %v292 = vunpack.c.l.b16 %v106
  %v293 = vunpack.c.l.b16 %v107
  %v294 = vunpack.c.l.b16 %v108
  %v295 = vpack.c.b16 %v216, %v215
  %v296 = vpack.c.b16 %v218, %v217
  %v297 = vpack.c.b16 %v220, %v219
  %v298 = vpack.c.b16 %v222, %v221
  %v299 = vpack.c.b16 %v224, %v223
  %v300 = vpack.c.b16 %v226, %v225
  %v301 = vpack.c.b16 %v228, %v227
  %v302 = vpack.c.b16 %v230, %v229
  %v303 = vpack.c.b16 %v232, %v231
  %v304 = vpack.c.b16 %v234, %v233
  %v305 = vpack.c.b16 %v236, %v235
  %v306 = vpack.c.b16 %v238, %v237
  %v307 = vpack.c.b16 %v240, %v239
  %v308 = vpack.c.b16 %v242, %v241
  %v309 = vpack.c.b16 %v244, %v243
  %v310 = vpack.c.b16 %v246, %v245
  %v311 = vpack.c.b16 %v248, %v247
  %v312 = vpack.c.b16 %v250, %v249
  %v313 = vpack.c.b16 %v252, %v251
  %v314 = vpack.c.b16 %v254, %v253
  %v315 = vpack.c.b16 %v256, %v255
  %v316 = vpack.c.b16 %v258, %v257
  %v317 = vpack.c.b16 %v260, %v259
  %v318 = vpack.c.b16 %v262, %v261
  %v319 = vpack.c.b16 %v264, %v263
  %v320 = vpack.c.b16 %v266, %v265
  %v321 = vpack.c.b16 %v268, %v267
  %v322 = vpack.c.b16 %v270, %v269
  %v323 = vpack.c.b16 %v272, %v271
  %v324 = vpack.c.b16 %v274, %v273
  %v325 = vpack.c.b16 %v276, %v275
  %v326 = vpack.c.b16 %v278, %v277
  %v327 = vpack.c.b16 %v280, %v279
  %v328 = vpack.c.b16 %v282, %v281
  %v329 = vpack.c.b16 %v284, %v283
  %v330 = vpack.c.b16 %v286, %v285
  %v331 = vpack.c.b16 %v288, %v287
  %v332 = vpack.c.b16 %v290, %v289
  %v333 = vpack.c.b16 %v292, %v291
  %v334 = vpack.c.b16 %v294, %v293
  %375 = vmatprep.subr.bf16.mxu0 0
  %376 = vmatpush1.bf16.msra.mxu0 %v295
  %377 = vmatprep.subr.bf16.mxu0 0
  %378 = vmatpush1.bf16.msra.mxu0 %v296
  %379 = vmatprep.subr.bf16.mxu0 0
  %380 = vmatpush1.bf16.msra.mxu0 %v297
  %381 = vmatprep.subr.bf16.mxu0 0
  %382 = vmatpush1.bf16.msra.mxu0 %v298
  %383 = vmatprep.subr.bf16.mxu0 0
  %384 = vmatpush1.bf16.msra.mxu0 %v299
  %385 = vmatprep.subr.bf16.mxu0 0
  %386 = vmatpush1.bf16.msra.mxu0 %v300
  %387 = vmatprep.subr.bf16.mxu0 0
  %388 = vmatpush1.bf16.msra.mxu0 %v301
  %389 = vmatprep.subr.bf16.mxu0 0
  %390 = vmatpush1.bf16.msra.mxu0 %v302
  %391 = vmatprep.subr.bf16.mxu0 0
  %392 = vmatpush1.bf16.msra.mxu0 %v303
  %393 = vmatprep.subr.bf16.mxu0 0
  %394 = vmatpush1.bf16.msra.mxu0 %v304
  %395 = vmatprep.subr.bf16.mxu0 0
  %396 = vmatpush1.bf16.msra.mxu0 %v305
  %397 = vmatprep.subr.bf16.mxu0 0
  %398 = vmatpush1.bf16.msra.mxu0 %v306
  %399 = vmatprep.subr.bf16.mxu0 0
  %400 = vmatpush1.bf16.msra.mxu0 %v307
  %401 = vmatprep.subr.bf16.mxu0 0
  %402 = vmatpush1.bf16.msra.mxu0 %v308
  %403 = vmatprep.subr.bf16.mxu0 0
  %404 = vmatpush1.bf16.msra.mxu0 %v309
  %405 = vmatprep.subr.bf16.mxu0 0
  %406 = vmatpush1.bf16.msra.mxu0 %v310
  %407 = vmatprep.mubr.bf16.mxu0 %v126
  %408 = vmatmul.mubr.bf16.gmra.mrb[0].mxu0 %v125
  %v409 = vpop.f32.mrb[0].mxu0
  %v410 = vadd.f32 0.0, %v409
  %v411 = vpop.f32.mrb[0].mxu0
  %v412 = vpop.f32.mrb[0].mxu0
  %v413 = vadd.f32 0.0, %v412
  %v414 = vpop.f32.mrb[0].mxu0
  %415 = vdwg.mxu0
  %416 = vmatprep.subr.bf16.mxu0 0
  %417 = vmatpush1.bf16.msra.mxu0 %v311
  %418 = vmatprep.subr.bf16.mxu0 0
  %419 = vmatpush1.bf16.msra.mxu0 %v312
  %420 = vmatprep.subr.bf16.mxu0 0
  %421 = vmatpush1.bf16.msra.mxu0 %v313
  %422 = vmatprep.subr.bf16.mxu0 0
  %423 = vmatpush1.bf16.msra.mxu0 %v314
  %424 = vmatprep.subr.bf16.mxu0 0
  %425 = vmatpush1.bf16.msra.mxu0 %v315
  %426 = vmatprep.subr.bf16.mxu0 0
  %427 = vmatpush1.bf16.msra.mxu0 %v316
  %428 = vmatprep.subr.bf16.mxu0 0
  %429 = vmatpush1.bf16.msra.mxu0 %v317
  %430 = vmatprep.subr.bf16.mxu0 0
  %431 = vmatpush1.bf16.msra.mxu0 %v318
  %432 = vmatprep.subr.bf16.mxu0 0
  %433 = vmatpush1.bf16.msra.mxu0 %v319
  %434 = vmatprep.subr.bf16.mxu0 0
  %435 = vmatpush1.bf16.msra.mxu0 %v320
  %436 = vmatprep.subr.bf16.mxu0 0
  %437 = vmatpush1.bf16.msra.mxu0 %v321
  %438 = vmatprep.subr.bf16.mxu0 0
  %439 = vmatpush1.bf16.msra.mxu0 %v322
  %440 = vmatprep.subr.bf16.mxu0 0
  %441 = vmatpush1.bf16.msra.mxu0 %v323
  %442 = vmatprep.subr.bf16.mxu0 0
  %443 = vmatpush1.bf16.msra.mxu0 %v324
  %444 = vmatprep.subr.bf16.mxu0 0
  %445 = vmatpush1.bf16.msra.mxu0 %v325
  %446 = vmatprep.subr.bf16.mxu0 0
  %447 = vmatpush1.bf16.msra.mxu0 %v326
  %448 = vmatprep.mubr.bf16.mxu0 %v128
  %449 = vmatmul.mubr.bf16.gmra.mrb[0].mxu0 %v127
  %v450 = vpop.f32.mrb[0].mxu0
  %v451 = vadd.f32 %v410, %v450
  %v452 = vpop.f32.mrb[0].mxu0
  %v453 = vpop.f32.mrb[0].mxu0
  %v454 = vadd.f32 %v413, %v453
  %v455 = vpop.f32.mrb[0].mxu0
  %456 = vdwg.mxu0
  %457 = vmatprep.subr.bf16.mxu0 0
  %458 = vmatpush1.bf16.msra.mxu0 %v327
  %459 = vmatprep.subr.bf16.mxu0 0
  %460 = vmatpush1.bf16.msra.mxu0 %v328
  %461 = vmatprep.subr.bf16.mxu0 0
  %462 = vmatpush1.bf16.msra.mxu0 %v329
  %463 = vmatprep.subr.bf16.mxu0 0
  %464 = vmatpush1.bf16.msra.mxu0 %v330
  %465 = vmatprep.subr.bf16.mxu0 0
  %466 = vmatpush1.bf16.msra.mxu0 %v331
  %467 = vmatprep.subr.bf16.mxu0 0
  %468 = vmatpush1.bf16.msra.mxu0 %v332
  %469 = vmatprep.subr.bf16.mxu0 0
  %470 = vmatpush1.bf16.msra.mxu0 %v333
  %471 = vmatprep.subr.bf16.mxu0 0
  %472 = vmatpush1.bf16.msra.mxu0 %v334
  %473 = vmatprep.subr.bf16.mxu0 0
  %474 = vmatpush1.bf16.msra.mxu0 0
  %475 = vmatprep.subr.bf16.mxu0 0
  %476 = vmatpush1.bf16.msra.mxu0 0
  %477 = vmatprep.subr.bf16.mxu0 0
  %478 = vmatpush1.bf16.msra.mxu0 0
  %479 = vmatprep.subr.bf16.mxu0 0
  %480 = vmatpush1.bf16.msra.mxu0 0
  %481 = vmatprep.subr.bf16.mxu0 0
  %482 = vmatpush1.bf16.msra.mxu0 0
  %483 = vmatprep.subr.bf16.mxu0 0
  %484 = vmatpush1.bf16.msra.mxu0 0
  %485 = vmatprep.subr.bf16.mxu0 0
  %486 = vmatpush1.bf16.msra.mxu0 0
  %487 = vmatprep.subr.bf16.mxu0 0
  %488 = vmatpush1.bf16.msra.mxu0 0
  %489 = vmatprep.mubr.bf16.mxu0 0
  %490 = vmatmul.mubr.bf16.gmra.mrb[0].mxu0 %v129
  %v491 = vpop.f32.mrb[0].mxu0
  %v492 = vadd.f32 %v451, %v491
  %v493 = vpop.f32.mrb[0].mxu0
  %v494 = vpop.f32.mrb[0].mxu0
  %v495 = vadd.f32 %v454, %v494
  %v496 = vpop.f32.mrb[0].mxu0
  %497 = vdwg.mxu0
  %v498 = vadd.f32 %v21, %v492
  %v499 = vadd.f32 %v22, %v495
  %500 = vst [vmem:[#allocation2] sm:$0xff] %v498
  %501 = vst [vmem:[#allocation2 + $0x8] sm:$0xff] %v499
  // Predicated region
  $region18: #{dqn_forward.6} parent=0 // pred_check
    %p502 = pneg %p15
  $region19: #{dqn_forward.6} parent=0 // pred_check_branch
    %504 = sbr.rel (%p502) target = $region21
  $region20: #{dqn_forward.6} parent=0 // pred_region
    %v505 = vld [vmem:[#allocation2] sm:$0xff]
    %v506 = vld [vmem:[#allocation2 + $0x8] sm:$0xff]
    %v507 = vld [vmem:[%s2] sm:$0x1]
    %v509 = vlaneseq
    %v510 = vshrl.u32 %v509, 7
    %v511 = vsub.s32 0, %v510
    %v512 = vrot.slane %v507, %v511
    %v514 = vadd.f32 %v505, %v512
    %v515 = vadd.f32 %v506, %v512
    %v516 = vmax.f32 %v514, 0.0
    %v517 = vmax.f32 %v515, 0.0
    %v518 = vpack.c.bf16 %v517, %v516
    %v520 = vunpack.c.l.b16 %v518
    %v521 = vunpack.c.h.b16 %v518
    %v522 = vpack.c.b16 %v520, %v520
    %v523 = vpack.c.b16 %v521, %v521
    %526 = vst [vmem:[%s3] sm:$0xf] %v522
    %527 = vst [vmem:[%s3 + $0x4] sm:$0xf] %v523
  $region21: #{dqn_forward.6} parent=0 // pred_fallthru
    _
  // Predicated region
  $region22: #{dqn_forward.6} parent=0 // pred_check
    _
  $region23: #{dqn_forward.6} parent=0 // pred_check_branch
    %529 = sbr.rel (0) target = $region25
  $region24: #{dqn_forward.6} parent=0 // pred_region
    _
  $region25: #{dqn_forward.6} parent=0 // pred_fallthru
    _
  // Predicated region
  $region26: #{dqn_forward.6} parent=0 // pred_check
    _
  $region27: #{dqn_forward.6} parent=0 // pred_check_branch
    %531 = sbr.rel (0) target = $region29
  $region28: #{dqn_forward.6} parent=0 // pred_region
    _
  $region29: #{dqn_forward.6} parent=0 // pred_fallthru
    _

// kernel: dqn_forward.7
$region0: #{dqn_forward.7}
  #allocation0 [shape = 'u32[]', space=smem, size = 0x4, offset = 0x4, fixed_abs, tag = 'smem constant byte address 0x4 - core index']
  #allocation1 [shape = 'u32[144,128]{1,0:T(1,128)}', space=vmem, size = 0x12000, scoped, tag = 'internal scratch']
  #allocation2 [shape = 'f32[16,512]{1,0:T(8,128)}', space=vmem, size = 0x8000, scoped, tag = 'scratch operand']
  %s0 = inlined_call_operand.vmem [shape: bf16[16,256], index: 0, kind: input, shape index: {}]
  %s1 = inlined_call_operand.vmem [shape: bf16[256,512], index: 1, kind: input, shape index: {}]
  %s2 = inlined_call_operand.vmem [shape: f32[1,512], index: 2, kind: input, shape index: {}]
  %s3 = inlined_call_operand.vmem [shape: bf16[512,128], index: 3, kind: input, shape index: {}]
  %s4 = inlined_call_operand.vmem [shape: f32[1,128], index: 4, kind: input, shape index: {}]
  %s5 = inlined_call_operand.vmem [shape: f32[16,128], index: 5, kind: output, shape index: {}]
  %s6 = sld [smem:[#allocation0]]
  $region38: #{dqn_forward.7} parent=0
    _
  %s8 = ssub.s32 1, %s6
  %s9 = scalar_select 0, %s8, %s6
  // Predicated region
  $region2: #{dqn_forward.7} parent=0 // pred_check
    _
  $region3: #{dqn_forward.7} parent=0 // pred_check_branch
    %11 = sbr.rel (0) target = $region5
  $region4: #{dqn_forward.7} parent=0 // pred_region
    _
  $region5: #{dqn_forward.7} parent=0 // pred_fallthru
    _
  // Predicated region
  $region6: #{dqn_forward.7} parent=0 // pred_check
    _
  $region7: #{dqn_forward.7} parent=0 // pred_check_branch
    %13 = sbr.rel (0) target = $region9
  $region8: #{dqn_forward.7} parent=0 // pred_region
    _
  $region9: #{dqn_forward.7} parent=0 // pred_fallthru
    _
  // Predicated region
  $region10: #{dqn_forward.7} parent=0 // pred_check
    _
  $region11: #{dqn_forward.7} parent=0 // pred_check_branch
    %15 = sbr.rel (0) target = $region13
  $region12: #{dqn_forward.7} parent=0 // pred_region
    _
  $region13: #{dqn_forward.7} parent=0 // pred_fallthru
    _
  // Predicated region
  $region14: #{dqn_forward.7} parent=0 // pred_check
    _
  $region15: #{dqn_forward.7} parent=0 // pred_check_branch
    %17 = sbr.rel (0) target = $region17
  $region16: #{dqn_forward.7} parent=0 // pred_region
    _
  $region17: #{dqn_forward.7} parent=0 // pred_fallthru
    _
  // Predicated region
  $region18: #{dqn_forward.7} parent=0 // pred_check
    _
  $region19: #{dqn_forward.7} parent=0 // pred_check_branch
    %19 = sbr.rel (0) target = $region21
  $region20: #{dqn_forward.7} parent=0 // pred_region
    _
  $region21: #{dqn_forward.7} parent=0 // pred_fallthru
    _
  %p21 = scmp.eq.s32.totalorder 0, 0
  // Predicated region
  $region22: #{dqn_forward.7} parent=0 // pred_check
    %p22 = pneg %p21
  $region23: #{dqn_forward.7} parent=0 // pred_check_branch
    %24 = sbr.rel (%p22) target = $region25
  $region24: #{dqn_forward.7} parent=0 // pred_region
    %25 = vst [vmem:[#allocation2] sm:$0xff] 0.0
    %26 = vst [vmem:[#allocation2 + $0x8] sm:$0xff] 0.0
    %27 = vst [vmem:[#allocation2 + $0x10] sm:$0xff] 0.0
    %28 = vst [vmem:[#allocation2 + $0x18] sm:$0xff] 0.0
    %29 = vst [vmem:[#allocation2 + $0x20] sm:$0xff] 0.0
    %30 = vst [vmem:[#allocation2 + $0x28] sm:$0xff] 0.0
    %31 = vst [vmem:[#allocation2 + $0x30] sm:$0xff] 0.0
    %32 = vst [vmem:[#allocation2 + $0x38] sm:$0xff] 0.0
  $region25: #{dqn_forward.7} parent=0 // pred_fallthru
    _
  %v33 = vld [vmem:[#allocation2] sm:$0xff]
  %v34 = vld [vmem:[#allocation2 + $0x8] sm:$0xff]
  %v35 = vld [vmem:[#allocation2 + $0x10] sm:$0xff]
  %v36 = vld [vmem:[#allocation2 + $0x18] sm:$0xff]
  %v37 = vld [vmem:[#allocation2 + $0x20] sm:$0xff]
  %v38 = vld [vmem:[#allocation2 + $0x28] sm:$0xff]
  %v39 = vld [vmem:[#allocation2 + $0x30] sm:$0xff]
  %v40 = vld [vmem:[#allocation2 + $0x38] sm:$0xff]
  %v41 = vld [vmem:[%s0] sm:$0xff]
  %v42 = vld [vmem:[%s0 + $0x8] sm:$0xff]
  %v43 = vld [vmem:[%s1] sm:$0xff]
  %v44 = vld [vmem:[%s1 + $0x8] sm:$0xff]
  %v45 = vld [vmem:[%s1 + $0x10] sm:$0xff]
  %v46 = vld [vmem:[%s1 + $0x18] sm:$0xff]
  %v47 = vld [vmem:[%s1 + $0x20] sm:$0xff]
  %v48 = vld [vmem:[%s1 + $0x28] sm:$0xff]
  %v49 = vld [vmem:[%s1 + $0x30] sm:$0xff]
  %v50 = vld [vmem:[%s1 + $0x38] sm:$0xff]
  %v51 = vld [vmem:[%s1 + $0x40] sm:$0xff]
  %v52 = vld [vmem:[%s1 + $0x48] sm:$0xff]
  %v53 = vld [vmem:[%s1 + $0x50] sm:$0xff]
  %v54 = vld [vmem:[%s1 + $0x58] sm:$0xff]
  %v55 = vld [vmem:[%s1 + $0x60] sm:$0xff]
  %v56 = vld [vmem:[%s1 + $0x68] sm:$0xff]
  %v57 = vld [vmem:[%s1 + $0x70] sm:$0xff]
  %v58 = vld [vmem:[%s1 + $0x78] sm:$0xff]
  %v59 = vld [vmem:[%s1 + $0x80] sm:$0xff]
  %v60 = vld [vmem:[%s1 + $0x88] sm:$0xff]
  %v61 = vld [vmem:[%s1 + $0x90] sm:$0xff]
  %v62 = vld [vmem:[%s1 + $0x98] sm:$0xff]
  %v63 = vld [vmem:[%s1 + $0xa0] sm:$0xff]
  %v64 = vld [vmem:[%s1 + $0xa8] sm:$0xff]
  %v65 = vld [vmem:[%s1 + $0xb0] sm:$0xff]
  %v66 = vld [vmem:[%s1 + $0xb8] sm:$0xff]
  %v67 = vld [vmem:[%s1 + $0xc0] sm:$0xff]
  %v68 = vld [vmem:[%s1 + $0xc8] sm:$0xff]
  %v69 = vld [vmem:[%s1 + $0xd0] sm:$0xff]
  %v70 = vld [vmem:[%s1 + $0xd8] sm:$0xff]
  %v71 = vld [vmem:[%s1 + $0xe0] sm:$0xff]
  %v72 = vld [vmem:[%s1 + $0xe8] sm:$0xff]
  %v73 = vld [vmem:[%s1 + $0xf0] sm:$0xff]
  %v74 = vld [vmem:[%s1 + $0xf8] sm:$0xff]
  %v75 = vld [vmem:[%s1 + $0x100] sm:$0xff]
  %v76 = vld [vmem:[%s1 + $0x108] sm:$0xff]
  %v77 = vld [vmem:[%s1 + $0x110] sm:$0xff]
  %v78 = vld [vmem:[%s1 + $0x118] sm:$0xff]
  %v79 = vld [vmem:[%s1 + $0x120] sm:$0xff]
  %v80 = vld [vmem:[%s1 + $0x128] sm:$0xff]
  %v81 = vld [vmem:[%s1 + $0x130] sm:$0xff]
  %v82 = vld [vmem:[%s1 + $0x138] sm:$0xff]
  %v83 = vld [vmem:[%s1 + $0x140] sm:$0xff]
  %v84 = vld [vmem:[%s1 + $0x148] sm:$0xff]
  %v85 = vld [vmem:[%s1 + $0x150] sm:$0xff]
  %v86 = vld [vmem:[%s1 + $0x158] sm:$0xff]
  %v87 = vld [vmem:[%s1 + $0x160] sm:$0xff]
  %v88 = vld [vmem:[%s1 + $0x168] sm:$0xff]
  %v89 = vld [vmem:[%s1 + $0x170] sm:$0xff]
  %v90 = vld [vmem:[%s1 + $0x178] sm:$0xff]
  %v91 = vld [vmem:[%s1 + $0x180] sm:$0xff]
  %v92 = vld [vmem:[%s1 + $0x188] sm:$0xff]
  %v93 = vld [vmem:[%s1 + $0x190] sm:$0xff]
  %v94 = vld [vmem:[%s1 + $0x198] sm:$0xff]
  %v95 = vld [vmem:[%s1 + $0x1a0] sm:$0xff]
  %v96 = vld [vmem:[%s1 + $0x1a8] sm:$0xff]
  %v97 = vld [vmem:[%s1 + $0x1b0] sm:$0xff]
  %v98 = vld [vmem:[%s1 + $0x1b8] sm:$0xff]
  %v99 = vld [vmem:[%s1 + $0x1c0] sm:$0xff]
  %v100 = vld [vmem:[%s1 + $0x1c8] sm:$0xff]
  %v101 = vld [vmem:[%s1 + $0x1d0] sm:$0xff]
  %v102 = vld [vmem:[%s1 + $0x1d8] sm:$0xff]
  %v103 = vld [vmem:[%s1 + $0x1e0] sm:$0xff]
  %v104 = vld [vmem:[%s1 + $0x1e8] sm:$0xff]
  %v105 = vld [vmem:[%s1 + $0x1f0] sm:$0xff]
  %v106 = vld [vmem:[%s1 + $0x1f8] sm:$0xff]
  %v109 = vunpack.c.l.b16 %v41
  %v110 = vunpack.c.h.b16 %v41
  %v111 = vunpack.c.l.b16 %v42
  %v112 = vunpack.c.h.b16 %v42
  %v113 = vpack.c.b16 %v111, %v109
  %v114 = vpack.c.b16 %v112, %v110
  %v181 = vunpack.c.l.b16 %v43
  %v182 = vunpack.c.h.b16 %v43
  %v183 = vunpack.c.l.b16 %v44
  %v184 = vunpack.c.h.b16 %v44
  %v185 = vunpack.c.l.b16 %v45
  %v186 = vunpack.c.h.b16 %v45
  %v187 = vunpack.c.l.b16 %v46
  %v188 = vunpack.c.h.b16 %v46
  %v189 = vunpack.c.l.b16 %v47
  %v190 = vunpack.c.h.b16 %v47
  %v191 = vunpack.c.l.b16 %v48
  %v192 = vunpack.c.h.b16 %v48
  %v193 = vunpack.c.l.b16 %v49
  %v194 = vunpack.c.h.b16 %v49
  %v195 = vunpack.c.l.b16 %v50
  %v196 = vunpack.c.h.b16 %v50
  %v197 = vunpack.c.l.b16 %v51
  %v198 = vunpack.c.h.b16 %v51
  %v199 = vunpack.c.l.b16 %v52
  %v200 = vunpack.c.h.b16 %v52
  %v201 = vunpack.c.l.b16 %v53
  %v202 = vunpack.c.h.b16 %v53
  %v203 = vunpack.c.l.b16 %v54
  %v204 = vunpack.c.h.b16 %v54
  %v205 = vunpack.c.l.b16 %v55
  %v206 = vunpack.c.h.b16 %v55
  %v207 = vunpack.c.l.b16 %v56
  %v208 = vunpack.c.h.b16 %v56
  %v209 = vunpack.c.l.b16 %v57
  %v210 = vunpack.c.h.b16 %v57
  %v211 = vunpack.c.l.b16 %v58
  %v212 = vunpack.c.h.b16 %v58
  %v213 = vunpack.c.l.b16 %v59
  %v214 = vunpack.c.h.b16 %v59
  %v215 = vunpack.c.l.b16 %v60
  %v216 = vunpack.c.h.b16 %v60
  %v217 = vunpack.c.l.b16 %v61
  %v218 = vunpack.c.h.b16 %v61
  %v219 = vunpack.c.l.b16 %v62
  %v220 = vunpack.c.h.b16 %v62
  %v221 = vunpack.c.l.b16 %v63
  %v222 = vunpack.c.h.b16 %v63
  %v223 = vunpack.c.l.b16 %v64
  %v224 = vunpack.c.h.b16 %v64
  %v225 = vunpack.c.l.b16 %v65
  %v226 = vunpack.c.h.b16 %v65
  %v227 = vunpack.c.l.b16 %v66
  %v228 = vunpack.c.h.b16 %v66
  %v229 = vunpack.c.l.b16 %v67
  %v230 = vunpack.c.h.b16 %v67
  %v231 = vunpack.c.l.b16 %v68
  %v232 = vunpack.c.h.b16 %v68
  %v233 = vunpack.c.l.b16 %v69
  %v234 = vunpack.c.h.b16 %v69
  %v235 = vunpack.c.l.b16 %v70
  %v236 = vunpack.c.h.b16 %v70
  %v237 = vunpack.c.l.b16 %v71
  %v238 = vunpack.c.h.b16 %v71
  %v239 = vunpack.c.l.b16 %v72
  %v240 = vunpack.c.h.b16 %v72
  %v241 = vunpack.c.l.b16 %v73
  %v242 = vunpack.c.h.b16 %v73
  %v243 = vunpack.c.l.b16 %v74
  %v244 = vunpack.c.h.b16 %v74
  %v245 = vunpack.c.l.b16 %v75
  %v246 = vunpack.c.h.b16 %v75
  %v247 = vunpack.c.l.b16 %v76
  %v248 = vunpack.c.h.b16 %v76
  %v249 = vunpack.c.l.b16 %v77
  %v250 = vunpack.c.h.b16 %v77
  %v251 = vunpack.c.l.b16 %v78
  %v252 = vunpack.c.h.b16 %v78
  %v253 = vunpack.c.l.b16 %v79
  %v254 = vunpack.c.h.b16 %v79
  %v255 = vunpack.c.l.b16 %v80
  %v256 = vunpack.c.h.b16 %v80
  %v257 = vunpack.c.l.b16 %v81
  %v258 = vunpack.c.h.b16 %v81
  %v259 = vunpack.c.l.b16 %v82
  %v260 = vunpack.c.h.b16 %v82
  %v261 = vunpack.c.l.b16 %v83
  %v262 = vunpack.c.h.b16 %v83
  %v263 = vunpack.c.l.b16 %v84
  %v264 = vunpack.c.h.b16 %v84
  %v265 = vunpack.c.l.b16 %v85
  %v266 = vunpack.c.h.b16 %v85
  %v267 = vunpack.c.l.b16 %v86
  %v268 = vunpack.c.h.b16 %v86
  %v269 = vunpack.c.l.b16 %v87
  %v270 = vunpack.c.h.b16 %v87
  %v271 = vunpack.c.l.b16 %v88
  %v272 = vunpack.c.h.b16 %v88
  %v273 = vunpack.c.l.b16 %v89
  %v274 = vunpack.c.h.b16 %v89
  %v275 = vunpack.c.l.b16 %v90
  %v276 = vunpack.c.h.b16 %v90
  %v277 = vunpack.c.l.b16 %v91
  %v278 = vunpack.c.h.b16 %v91
  %v279 = vunpack.c.l.b16 %v92
  %v280 = vunpack.c.h.b16 %v92
  %v281 = vunpack.c.l.b16 %v93
  %v282 = vunpack.c.h.b16 %v93
  %v283 = vunpack.c.l.b16 %v94
  %v284 = vunpack.c.h.b16 %v94
  %v285 = vunpack.c.l.b16 %v95
  %v286 = vunpack.c.h.b16 %v95
  %v287 = vunpack.c.l.b16 %v96
  %v288 = vunpack.c.h.b16 %v96
  %v289 = vunpack.c.l.b16 %v97
  %v290 = vunpack.c.h.b16 %v97
  %v291 = vunpack.c.l.b16 %v98
  %v292 = vunpack.c.h.b16 %v98
  %v293 = vunpack.c.l.b16 %v99
  %v294 = vunpack.c.h.b16 %v99
  %v295 = vunpack.c.l.b16 %v100
  %v296 = vunpack.c.h.b16 %v100
  %v297 = vunpack.c.l.b16 %v101
  %v298 = vunpack.c.h.b16 %v101
  %v299 = vunpack.c.l.b16 %v102
  %v300 = vunpack.c.h.b16 %v102
  %v301 = vunpack.c.l.b16 %v103
  %v302 = vunpack.c.h.b16 %v103
  %v303 = vunpack.c.l.b16 %v104
  %v304 = vunpack.c.h.b16 %v104
  %v305 = vunpack.c.l.b16 %v105
  %v306 = vunpack.c.h.b16 %v105
  %v307 = vunpack.c.l.b16 %v106
  %v308 = vunpack.c.h.b16 %v106
  %v309 = vpack.c.b16 %v185, %v181
  %v310 = vpack.c.b16 %v186, %v182
  %v311 = vpack.c.b16 %v187, %v183
  %v312 = vpack.c.b16 %v188, %v184
  %v313 = vpack.c.b16 %v193, %v189
  %v314 = vpack.c.b16 %v194, %v190
  %v315 = vpack.c.b16 %v195, %v191
  %v316 = vpack.c.b16 %v196, %v192
  %v317 = vpack.c.b16 %v201, %v197
  %v318 = vpack.c.b16 %v202, %v198
  %v319 = vpack.c.b16 %v203, %v199
  %v320 = vpack.c.b16 %v204, %v200
  %v321 = vpack.c.b16 %v209, %v205
  %v322 = vpack.c.b16 %v210, %v206
  %v323 = vpack.c.b16 %v211, %v207
  %v324 = vpack.c.b16 %v212, %v208
  %v325 = vpack.c.b16 %v217, %v213
  %v326 = vpack.c.b16 %v218, %v214
  %v327 = vpack.c.b16 %v219, %v215
  %v328 = vpack.c.b16 %v220, %v216
  %v329 = vpack.c.b16 %v225, %v221
  %v330 = vpack.c.b16 %v226, %v222
  %v331 = vpack.c.b16 %v227, %v223
  %v332 = vpack.c.b16 %v228, %v224
  %v333 = vpack.c.b16 %v233, %v229
  %v334 = vpack.c.b16 %v234, %v230
  %v335 = vpack.c.b16 %v235, %v231
  %v336 = vpack.c.b16 %v236, %v232
  %v337 = vpack.c.b16 %v241, %v237
  %v338 = vpack.c.b16 %v242, %v238
  %v339 = vpack.c.b16 %v243, %v239
  %v340 = vpack.c.b16 %v244, %v240
  %v341 = vpack.c.b16 %v249, %v245
  %v342 = vpack.c.b16 %v250, %v246
  %v343 = vpack.c.b16 %v251, %v247
  %v344 = vpack.c.b16 %v252, %v248
  %v345 = vpack.c.b16 %v257, %v253
  %v346 = vpack.c.b16 %v258, %v254
  %v347 = vpack.c.b16 %v259, %v255
  %v348 = vpack.c.b16 %v260, %v256
  %v349 = vpack.c.b16 %v265, %v261
  %v350 = vpack.c.b16 %v266, %v262
  %v351 = vpack.c.b16 %v267, %v263
  %v352 = vpack.c.b16 %v268, %v264
  %v353 = vpack.c.b16 %v273, %v269
  %v354 = vpack.c.b16 %v274, %v270
  %v355 = vpack.c.b16 %v275, %v271
  %v356 = vpack.c.b16 %v276, %v272
  %v357 = vpack.c.b16 %v281, %v277
  %v358 = vpack.c.b16 %v282, %v278
  %v359 = vpack.c.b16 %v283, %v279
  %v360 = vpack.c.b16 %v284, %v280
  %v361 = vpack.c.b16 %v289, %v285
  %v362 = vpack.c.b16 %v290, %v286
  %v363 = vpack.c.b16 %v291, %v287
  %v364 = vpack.c.b16 %v292, %v288
  %v365 = vpack.c.b16 %v297, %v293
  %v366 = vpack.c.b16 %v298, %v294
  %v367 = vpack.c.b16 %v299, %v295
  %v368 = vpack.c.b16 %v300, %v296
  %v369 = vpack.c.b16 %v305, %v301
  %v370 = vpack.c.b16 %v306, %v302
  %v371 = vpack.c.b16 %v307, %v303
  %v372 = vpack.c.b16 %v308, %v304
  %437 = vmatprep.subr.bf16.mxu0 %v310
  %438 = vmatpush1.bf16.msra.mxu0 %v309
  %439 = vmatprep.subr.bf16.mxu0 %v314
  %440 = vmatpush1.bf16.msra.mxu0 %v313
  %441 = vmatprep.subr.bf16.mxu0 %v318
  %442 = vmatpush1.bf16.msra.mxu0 %v317
  %443 = vmatprep.subr.bf16.mxu0 %v322
  %444 = vmatpush1.bf16.msra.mxu0 %v321
  %445 = vmatprep.subr.bf16.mxu0 %v326
  %446 = vmatpush1.bf16.msra.mxu0 %v325
  %447 = vmatprep.subr.bf16.mxu0 %v330
  %448 = vmatpush1.bf16.msra.mxu0 %v329
  %449 = vmatprep.subr.bf16.mxu0 %v334
  %450 = vmatpush1.bf16.msra.mxu0 %v333
  %451 = vmatprep.subr.bf16.mxu0 %v338
  %452 = vmatpush1.bf16.msra.mxu0 %v337
  %453 = vmatprep.subr.bf16.mxu0 %v342
  %454 = vmatpush1.bf16.msra.mxu0 %v341
  %455 = vmatprep.subr.bf16.mxu0 %v346
  %456 = vmatpush1.bf16.msra.mxu0 %v345
  %457 = vmatprep.subr.bf16.mxu0 %v350
  %458 = vmatpush1.bf16.msra.mxu0 %v349
  %459 = vmatprep.subr.bf16.mxu0 %v354
  %460 = vmatpush1.bf16.msra.mxu0 %v353
  %461 = vmatprep.subr.bf16.mxu0 %v358
  %462 = vmatpush1.bf16.msra.mxu0 %v357
  %463 = vmatprep.subr.bf16.mxu0 %v362
  %464 = vmatpush1.bf16.msra.mxu0 %v361
  %465 = vmatprep.subr.bf16.mxu0 %v366
  %466 = vmatpush1.bf16.msra.mxu0 %v365
  %467 = vmatprep.subr.bf16.mxu0 %v370
  %468 = vmatpush1.bf16.msra.mxu0 %v369
  %469 = vmatprep.mubr.bf16.mxu0 %v114
  %470 = vmatmul.mubr.bf16.gmra.mrb[0].mxu0 %v113
  %v471 = vpop.f32.mrb[0].mxu0
  %v472 = vadd.f32 0.0, %v471
  %v473 = vpop.f32.mrb[0].mxu0
  %v474 = vadd.f32 0.0, %v473
  %v475 = vpop.f32.mrb[0].mxu0
  %v476 = vadd.f32 0.0, %v475
  %v477 = vpop.f32.mrb[0].mxu0
  %v478 = vadd.f32 0.0, %v477
  %479 = vdwg.mxu0
  %480 = vmatprep.subr.bf16.mxu0 %v312
  %481 = vmatpush1.bf16.msra.mxu0 %v311
  %482 = vmatprep.subr.bf16.mxu0 %v316
  %483 = vmatpush1.bf16.msra.mxu0 %v315
  %484 = vmatprep.subr.bf16.mxu0 %v320
  %485 = vmatpush1.bf16.msra.mxu0 %v319
  %486 = vmatprep.subr.bf16.mxu0 %v324
  %487 = vmatpush1.bf16.msra.mxu0 %v323
  %488 = vmatprep.subr.bf16.mxu0 %v328
  %489 = vmatpush1.bf16.msra.mxu0 %v327
  %490 = vmatprep.subr.bf16.mxu0 %v332
  %491 = vmatpush1.bf16.msra.mxu0 %v331
  %492 = vmatprep.subr.bf16.mxu0 %v336
  %493 = vmatpush1.bf16.msra.mxu0 %v335
  %494 = vmatprep.subr.bf16.mxu0 %v340
  %495 = vmatpush1.bf16.msra.mxu0 %v339
  %496 = vmatprep.subr.bf16.mxu0 %v344
  %497 = vmatpush1.bf16.msra.mxu0 %v343
  %498 = vmatprep.subr.bf16.mxu0 %v348
  %499 = vmatpush1.bf16.msra.mxu0 %v347
  %500 = vmatprep.subr.bf16.mxu0 %v352
  %501 = vmatpush1.bf16.msra.mxu0 %v351
  %502 = vmatprep.subr.bf16.mxu0 %v356
  %503 = vmatpush1.bf16.msra.mxu0 %v355
  %504 = vmatprep.subr.bf16.mxu0 %v360
  %505 = vmatpush1.bf16.msra.mxu0 %v359
  %506 = vmatprep.subr.bf16.mxu0 %v364
  %507 = vmatpush1.bf16.msra.mxu0 %v363
  %508 = vmatprep.subr.bf16.mxu0 %v368
  %509 = vmatpush1.bf16.msra.mxu0 %v367
  %510 = vmatprep.subr.bf16.mxu0 %v372
  %511 = vmatpush1.bf16.msra.mxu0 %v371
  %512 = vmatprep.mubr.bf16.mxu0 %v114
  %513 = vmatmul.mubr.bf16.gmra.mrb[0].mxu0 %v113
  %v514 = vpop.f32.mrb[0].mxu0
  %v515 = vadd.f32 0.0, %v514
  %v516 = vpop.f32.mrb[0].mxu0
  %v517 = vadd.f32 0.0, %v516
  %v518 = vpop.f32.mrb[0].mxu0
  %v519 = vadd.f32 0.0, %v518
  %v520 = vpop.f32.mrb[0].mxu0
  %v521 = vadd.f32 0.0, %v520
  %522 = vdwg.mxu0
  %v523 = vadd.f32 %v33, %v472
  %v524 = vadd.f32 %v34, %v474
  %v525 = vadd.f32 %v35, %v515
  %v526 = vadd.f32 %v36, %v517
  %v527 = vadd.f32 %v37, %v476
  %v528 = vadd.f32 %v38, %v478
  %v529 = vadd.f32 %v39, %v519
  %v530 = vadd.f32 %v40, %v521
  %531 = vst [vmem:[#allocation2] sm:$0xff] %v523
  %532 = vst [vmem:[#allocation2 + $0x8] sm:$0xff] %v524
  %533 = vst [vmem:[#allocation2 + $0x10] sm:$0xff] %v525
  %534 = vst [vmem:[#allocation2 + $0x18] sm:$0xff] %v526
  %535 = vst [vmem:[#allocation2 + $0x20] sm:$0xff] %v527
  %536 = vst [vmem:[#allocation2 + $0x28] sm:$0xff] %v528
  %537 = vst [vmem:[#allocation2 + $0x30] sm:$0xff] %v529
  %538 = vst [vmem:[#allocation2 + $0x38] sm:$0xff] %v530
  // Predicated region
  $region26: #{dqn_forward.7} parent=0 // pred_check
    %p539 = pneg %p21
  $region27: #{dqn_forward.7} parent=0 // pred_check_branch
    %541 = sbr.rel (%p539) target = $region29
  $region28: #{dqn_forward.7} parent=0 // pred_region
    %v542 = vld [vmem:[#allocation2] sm:$0xff]
    %v543 = vld [vmem:[#allocation2 + $0x8] sm:$0xff]
    %v544 = vld [vmem:[#allocation2 + $0x10] sm:$0xff]
    %v545 = vld [vmem:[#allocation2 + $0x18] sm:$0xff]
    %v546 = vld [vmem:[#allocation2 + $0x20] sm:$0xff]
    %v547 = vld [vmem:[#allocation2 + $0x28] sm:$0xff]
    %v548 = vld [vmem:[#allocation2 + $0x30] sm:$0xff]
    %v549 = vld [vmem:[#allocation2 + $0x38] sm:$0xff]
    %v550 = vld [vmem:[%s2] sm:$0xf]
    %v552 = vlaneseq
    %v553 = vshrl.u32 %v552, 7
    %v554 = vsub.s32 0, %v553
    %v555 = vrot.slane %v550, %v554
    %v556 = vlaneseq
    %v557 = vshrl.u32 %v556, 7
    %v558 = vsub.s32 1, %v557
    %v559 = vrot.slane %v550, %v558
    %v560 = vlaneseq
    %v561 = vshrl.u32 %v560, 7
    %v562 = vsub.s32 2, %v561
    %v563 = vrot.slane %v550, %v562
    %v564 = vlaneseq
    %v565 = vshrl.u32 %v564, 7
    %v566 = vsub.s32 3, %v565
    %v567 = vrot.slane %v550, %v566
    %v572 = vadd.f32 %v542, %v555
    %v573 = vadd.f32 %v543, %v559
    %v574 = vadd.f32 %v544, %v563
    %v575 = vadd.f32 %v545, %v567
    %v576 = vadd.f32 %v546, %v555
    %v577 = vadd.f32 %v547, %v559
    %v578 = vadd.f32 %v548, %v563
    %v579 = vadd.f32 %v549, %v567
    %v580 = vmax.f32 %v572, 0.0
    %v581 = vmax.f32 %v573, 0.0
    %v582 = vmax.f32 %v574, 0.0
    %v583 = vmax.f32 %v575, 0.0
    %v584 = vmax.f32 %v576, 0.0
    %v585 = vmax.f32 %v577, 0.0
    %v586 = vmax.f32 %v578, 0.0
    %v587 = vmax.f32 %v579, 0.0
    %v588 = vpack.c.bf16 %v584, %v580
    %v589 = vpack.c.bf16 %v585, %v581
    %v590 = vpack.c.bf16 %v586, %v582
    %v591 = vpack.c.bf16 %v587, %v583
    %v592 = vld [vmem:[%s3] sm:$0xf]
    %v593 = vld [vmem:[%s3 + $0x4] sm:$0xf]
    %v594 = vld [vmem:[%s3 + $0x8] sm:$0xf]
    %v595 = vld [vmem:[%s3 + $0xc] sm:$0xf]
    %v596 = vld [vmem:[%s3 + $0x10] sm:$0xf]
    %v597 = vld [vmem:[%s3 + $0x14] sm:$0xf]
    %v598 = vld [vmem:[%s3 + $0x18] sm:$0xf]
    %v599 = vld [vmem:[%s3 + $0x1c] sm:$0xf]
    %v600 = vld [vmem:[%s3 + $0x20] sm:$0xf]
    %v601 = vld [vmem:[%s3 + $0x24] sm:$0xf]
    %v602 = vld [vmem:[%s3 + $0x28] sm:$0xf]
    %v603 = vld [vmem:[%s3 + $0x2c] sm:$0xf]
    %v604 = vld [vmem:[%s3 + $0x30] sm:$0xf]
    %v605 = vld [vmem:[%s3 + $0x34] sm:$0xf]
    %v606 = vld [vmem:[%s3 + $0x38] sm:$0xf]
    %v607 = vld [vmem:[%s3 + $0x3c] sm:$0xf]
    %v608 = vld [vmem:[%s3 + $0x40] sm:$0xf]
    %v609 = vld [vmem:[%s3 + $0x44] sm:$0xf]
    %v610 = vld [vmem:[%s3 + $0x48] sm:$0xf]
    %v611 = vld [vmem:[%s3 + $0x4c] sm:$0xf]
    %v612 = vld [vmem:[%s3 + $0x50] sm:$0xf]
    %v613 = vld [vmem:[%s3 + $0x54] sm:$0xf]
    %v614 = vld [vmem:[%s3 + $0x58] sm:$0xf]
    %v615 = vld [vmem:[%s3 + $0x5c] sm:$0xf]
    %v616 = vld [vmem:[%s3 + $0x60] sm:$0xf]
    %v617 = vld [vmem:[%s3 + $0x64] sm:$0xf]
    %v618 = vld [vmem:[%s3 + $0x68] sm:$0xf]
    %v619 = vld [vmem:[%s3 + $0x6c] sm:$0xf]
    %v620 = vld [vmem:[%s3 + $0x70] sm:$0xf]
    %v621 = vld [vmem:[%s3 + $0x74] sm:$0xf]
    %v622 = vld [vmem:[%s3 + $0x78] sm:$0xf]
    %v623 = vld [vmem:[%s3 + $0x7c] sm:$0xf]
    %v624 = vld [vmem:[%s3 + $0x80] sm:$0xf]
    %v625 = vld [vmem:[%s3 + $0x84] sm:$0xf]
    %v626 = vld [vmem:[%s3 + $0x88] sm:$0xf]
    %v627 = vld [vmem:[%s3 + $0x8c] sm:$0xf]
    %v628 = vld [vmem:[%s3 + $0x90] sm:$0xf]
    %v629 = vld [vmem:[%s3 + $0x94] sm:$0xf]
    %v630 = vld [vmem:[%s3 + $0x98] sm:$0xf]
    %v631 = vld [vmem:[%s3 + $0x9c] sm:$0xf]
    %v632 = vld [vmem:[%s3 + $0xa0] sm:$0xf]
    %v633 = vld [vmem:[%s3 + $0xa4] sm:$0xf]
    %v634 = vld [vmem:[%s3 + $0xa8] sm:$0xf]
    %v635 = vld [vmem:[%s3 + $0xac] sm:$0xf]
    %v636 = vld [vmem:[%s3 + $0xb0] sm:$0xf]
    %v637 = vld [vmem:[%s3 + $0xb4] sm:$0xf]
    %v638 = vld [vmem:[%s3 + $0xb8] sm:$0xf]
    %v639 = vld [vmem:[%s3 + $0xbc] sm:$0xf]
    %v640 = vld [vmem:[%s3 + $0xc0] sm:$0xf]
    %v641 = vld [vmem:[%s3 + $0xc4] sm:$0xf]
    %v642 = vld [vmem:[%s3 + $0xc8] sm:$0xf]
    %v643 = vld [vmem:[%s3 + $0xcc] sm:$0xf]
    %v644 = vld [vmem:[%s3 + $0xd0] sm:$0xf]
    %v645 = vld [vmem:[%s3 + $0xd4] sm:$0xf]
    %v646 = vld [vmem:[%s3 + $0xd8] sm:$0xf]
    %v647 = vld [vmem:[%s3 + $0xdc] sm:$0xf]
    %v648 = vld [vmem:[%s3 + $0xe0] sm:$0xf]
    %v649 = vld [vmem:[%s3 + $0xe4] sm:$0xf]
    %v650 = vld [vmem:[%s3 + $0xe8] sm:$0xf]
    %v651 = vld [vmem:[%s3 + $0xec] sm:$0xf]
    %v652 = vld [vmem:[%s3 + $0xf0] sm:$0xf]
    %v653 = vld [vmem:[%s3 + $0xf4] sm:$0xf]
    %v654 = vld [vmem:[%s3 + $0xf8] sm:$0xf]
    %v655 = vld [vmem:[%s3 + $0xfc] sm:$0xf]
    %v656 = vld [vmem:[%s4] sm:$0x1]
    %v658 = vlaneseq
    %v659 = vshrl.u32 %v658, 7
    %v660 = vsub.s32 0, %v659
    %v661 = vrot.slane %v656, %v660
    %v727 = vunpack.c.l.b16 %v592
    %v728 = vunpack.c.l.b16 %v593
    %v729 = vunpack.c.l.b16 %v594
    %v730 = vunpack.c.l.b16 %v595
    %v731 = vunpack.c.l.b16 %v596
    %v732 = vunpack.c.l.b16 %v597
    %v733 = vunpack.c.l.b16 %v598
    %v734 = vunpack.c.l.b16 %v599
    %v735 = vunpack.c.l.b16 %v600
    %v736 = vunpack.c.l.b16 %v601
    %v737 = vunpack.c.l.b16 %v602
    %v738 = vunpack.c.l.b16 %v603
    %v739 = vunpack.c.l.b16 %v604
    %v740 = vunpack.c.l.b16 %v605
    %v741 = vunpack.c.l.b16 %v606
    %v742 = vunpack.c.l.b16 %v607
    %v743 = vunpack.c.l.b16 %v608
    %v744 = vunpack.c.l.b16 %v609
    %v745 = vunpack.c.l.b16 %v610
    %v746 = vunpack.c.l.b16 %v611
    %v747 = vunpack.c.l.b16 %v612
    %v748 = vunpack.c.l.b16 %v613
    %v749 = vunpack.c.l.b16 %v614
    %v750 = vunpack.c.l.b16 %v615
    %v751 = vunpack.c.l.b16 %v616
    %v752 = vunpack.c.l.b16 %v617
    %v753 = vunpack.c.l.b16 %v618
    %v754 = vunpack.c.l.b16 %v619
    %v755 = vunpack.c.l.b16 %v620
    %v756 = vunpack.c.l.b16 %v621
    %v757 = vunpack.c.l.b16 %v622
    %v758 = vunpack.c.l.b16 %v623
    %v759 = vunpack.c.l.b16 %v624
    %v760 = vunpack.c.l.b16 %v625
    %v761 = vunpack.c.l.b16 %v626
    %v762 = vunpack.c.l.b16 %v627
    %v763 = vunpack.c.l.b16 %v628
    %v764 = vunpack.c.l.b16 %v629
    %v765 = vunpack.c.l.b16 %v630
    %v766 = vunpack.c.l.b16 %v631
    %v767 = vunpack.c.l.b16 %v632
    %v768 = vunpack.c.l.b16 %v633
    %v769 = vunpack.c.l.b16 %v634
    %v770 = vunpack.c.l.b16 %v635
    %v771 = vunpack.c.l.b16 %v636
    %v772 = vunpack.c.l.b16 %v637
    %v773 = vunpack.c.l.b16 %v638
    %v774 = vunpack.c.l.b16 %v639
    %v775 = vunpack.c.l.b16 %v640
    %v776 = vunpack.c.l.b16 %v641
    %v777 = vunpack.c.l.b16 %v642
    %v778 = vunpack.c.l.b16 %v643
    %v779 = vunpack.c.l.b16 %v644
    %v780 = vunpack.c.l.b16 %v645
    %v781 = vunpack.c.l.b16 %v646
    %v782 = vunpack.c.l.b16 %v647
    %v783 = vunpack.c.l.b16 %v648
    %v784 = vunpack.c.l.b16 %v649
    %v785 = vunpack.c.l.b16 %v650
    %v786 = vunpack.c.l.b16 %v651
    %v787 = vunpack.c.l.b16 %v652
    %v788 = vunpack.c.l.b16 %v653
    %v789 = vunpack.c.l.b16 %v654
    %v790 = vunpack.c.l.b16 %v655
    %v791 = vpack.c.b16 %v728, %v727
    %v792 = vpack.c.b16 %v730, %v729
    %v793 = vpack.c.b16 %v732, %v731
    %v794 = vpack.c.b16 %v734, %v733
    %v795 = vpack.c.b16 %v736, %v735
    %v796 = vpack.c.b16 %v738, %v737
    %v797 = vpack.c.b16 %v740, %v739
    %v798 = vpack.c.b16 %v742, %v741
    %v799 = vpack.c.b16 %v744, %v743
    %v800 = vpack.c.b16 %v746, %v745
    %v801 = vpack.c.b16 %v748, %v747
    %v802 = vpack.c.b16 %v750, %v749
    %v803 = vpack.c.b16 %v752, %v751
    %v804 = vpack.c.b16 %v754, %v753
    %v805 = vpack.c.b16 %v756, %v755
    %v806 = vpack.c.b16 %v758, %v757
    %v807 = vpack.c.b16 %v760, %v759
    %v808 = vpack.c.b16 %v762, %v761
    %v809 = vpack.c.b16 %v764, %v763
    %v810 = vpack.c.b16 %v766, %v765
    %v811 = vpack.c.b16 %v768, %v767
    %v812 = vpack.c.b16 %v770, %v769
    %v813 = vpack.c.b16 %v772, %v771
    %v814 = vpack.c.b16 %v774, %v773
    %v815 = vpack.c.b16 %v776, %v775
    %v816 = vpack.c.b16 %v778, %v777
    %v817 = vpack.c.b16 %v780, %v779
    %v818 = vpack.c.b16 %v782, %v781
    %v819 = vpack.c.b16 %v784, %v783
    %v820 = vpack.c.b16 %v786, %v785
    %v821 = vpack.c.b16 %v788, %v787
    %v822 = vpack.c.b16 %v790, %v789
    %855 = vmatprep.subr.bf16.mxu0 0
    %856 = vmatpush1.bf16.msra.mxu0 %v791
    %857 = vmatprep.subr.bf16.mxu0 0
    %858 = vmatpush1.bf16.msra.mxu0 %v792
    %859 = vmatprep.subr.bf16.mxu0 0
    %860 = vmatpush1.bf16.msra.mxu0 %v793
    %861 = vmatprep.subr.bf16.mxu0 0
    %862 = vmatpush1.bf16.msra.mxu0 %v794
    %863 = vmatprep.subr.bf16.mxu0 0
    %864 = vmatpush1.bf16.msra.mxu0 %v795
    %865 = vmatprep.subr.bf16.mxu0 0
    %866 = vmatpush1.bf16.msra.mxu0 %v796
    %867 = vmatprep.subr.bf16.mxu0 0
    %868 = vmatpush1.bf16.msra.mxu0 %v797
    %869 = vmatprep.subr.bf16.mxu0 0
    %870 = vmatpush1.bf16.msra.mxu0 %v798
    %871 = vmatprep.subr.bf16.mxu0 0
    %872 = vmatpush1.bf16.msra.mxu0 %v799
    %873 = vmatprep.subr.bf16.mxu0 0
    %874 = vmatpush1.bf16.msra.mxu0 %v800
    %875 = vmatprep.subr.bf16.mxu0 0
    %876 = vmatpush1.bf16.msra.mxu0 %v801
    %877 = vmatprep.subr.bf16.mxu0 0
    %878 = vmatpush1.bf16.msra.mxu0 %v802
    %879 = vmatprep.subr.bf16.mxu0 0
    %880 = vmatpush1.bf16.msra.mxu0 %v803
    %881 = vmatprep.subr.bf16.mxu0 0
    %882 = vmatpush1.bf16.msra.mxu0 %v804
    %883 = vmatprep.subr.bf16.mxu0 0
    %884 = vmatpush1.bf16.msra.mxu0 %v805
    %885 = vmatprep.subr.bf16.mxu0 0
    %886 = vmatpush1.bf16.msra.mxu0 %v806
    %887 = vmatprep.mubr.bf16.mxu0 %v589
    %888 = vmatmul.mubr.bf16.gmra.mrb[0].mxu0 %v588
    %v889 = vpop.f32.mrb[0].mxu0
    %v890 = vadd.f32 %v661, %v889
    %v891 = vpop.f32.mrb[0].mxu0
    %v892 = vpop.f32.mrb[0].mxu0
    %v893 = vadd.f32 %v661, %v892
    %v894 = vpop.f32.mrb[0].mxu0
    %895 = vdwg.mxu0
    %896 = vmatprep.subr.bf16.mxu0 0
    %897 = vmatpush1.bf16.msra.mxu0 %v807
    %898 = vmatprep.subr.bf16.mxu0 0
    %899 = vmatpush1.bf16.msra.mxu0 %v808
    %900 = vmatprep.subr.bf16.mxu0 0
    %901 = vmatpush1.bf16.msra.mxu0 %v809
    %902 = vmatprep.subr.bf16.mxu0 0
    %903 = vmatpush1.bf16.msra.mxu0 %v810
    %904 = vmatprep.subr.bf16.mxu0 0
    %905 = vmatpush1.bf16.msra.mxu0 %v811
    %906 = vmatprep.subr.bf16.mxu0 0
    %907 = vmatpush1.bf16.msra.mxu0 %v812
    %908 = vmatprep.subr.bf16.mxu0 0
    %909 = vmatpush1.bf16.msra.mxu0 %v813
    %910 = vmatprep.subr.bf16.mxu0 0
    %911 = vmatpush1.bf16.msra.mxu0 %v814
    %912 = vmatprep.subr.bf16.mxu0 0
    %913 = vmatpush1.bf16.msra.mxu0 %v815
    %914 = vmatprep.subr.bf16.mxu0 0
    %915 = vmatpush1.bf16.msra.mxu0 %v816
    %916 = vmatprep.subr.bf16.mxu0 0
    %917 = vmatpush1.bf16.msra.mxu0 %v817
    %918 = vmatprep.subr.bf16.mxu0 0
    %919 = vmatpush1.bf16.msra.mxu0 %v818
    %920 = vmatprep.subr.bf16.mxu0 0
    %921 = vmatpush1.bf16.msra.mxu0 %v819
    %922 = vmatprep.subr.bf16.mxu0 0
    %923 = vmatpush1.bf16.msra.mxu0 %v820
    %924 = vmatprep.subr.bf16.mxu0 0
    %925 = vmatpush1.bf16.msra.mxu0 %v821
    %926 = vmatprep.subr.bf16.mxu0 0
    %927 = vmatpush1.bf16.msra.mxu0 %v822
    %928 = vmatprep.mubr.bf16.mxu0 %v591
    %929 = vmatmul.mubr.bf16.gmra.mrb[0].mxu0 %v590
    %v930 = vpop.f32.mrb[0].mxu0
    %v931 = vadd.f32 %v890, %v930
    %v932 = vpop.f32.mrb[0].mxu0
    %v933 = vpop.f32.mrb[0].mxu0
    %v934 = vadd.f32 %v893, %v933
    %v935 = vpop.f32.mrb[0].mxu0
    %936 = vdwg.mxu0
    %937 = vst [vmem:[%s5] sm:$0xff] %v931
    %938 = vst [vmem:[%s5 + $0x8] sm:$0xff] %v934
  $region29: #{dqn_forward.7} parent=0 // pred_fallthru
    _
  // Predicated region
  $region30: #{dqn_forward.7} parent=0 // pred_check
    _
  $region31: #{dqn_forward.7} parent=0 // pred_check_branch
    %940 = sbr.rel (0) target = $region33
  $region32: #{dqn_forward.7} parent=0 // pred_region
    _
  $region33: #{dqn_forward.7} parent=0 // pred_fallthru
    _
  // Predicated region
  $region34: #{dqn_forward.7} parent=0 // pred_check
    _
  $region35: #{dqn_forward.7} parent=0 // pred_check_branch
    %942 = sbr.rel (0) target = $region37
  $region36: #{dqn_forward.7} parent=0 // pred_region
    _
  $region37: #{dqn_forward.7} parent=0 // pred_fallthru
    _

</llo_original>
